<compile_context>
chip_gen: v7x
topology: tpu7x:2x2x1
jax: 0.10.0
libtpu: 0.0.40
codegen_flags: <defaults>
</compile_context>

<pallas_src>
import numpy as np
import jax
import jax.numpy as jnp
from jax.experimental import pallas as pl
from jax.experimental.pallas import tpu as pltpu

KSIZE = 7
PAD = 3

_ROLL_SIGN = None


def _roll_sign():
    """+1 if pltpu.roll matches jnp.roll (result[i] = x[i - shift]), -1 otherwise."""
    global _ROLL_SIGN
    if _ROLL_SIGN is not None:
        return _ROLL_SIGN

    def probe(x_ref, o_ref):
        o_ref[...] = pltpu.roll(x_ref[...], 1, axis=1)

    x = jnp.tile(jnp.arange(128, dtype=jnp.float32)[None, :], (8, 1))
    try:
        y = pl.pallas_call(probe, out_shape=jax.ShapeDtypeStruct((8, 128), jnp.float32))(x)
        _ROLL_SIGN = 1 if float(y[0, 1]) < 0.5 else -1
    except Exception:
        _ROLL_SIGN = 1
    return _ROLL_SIGN


def _chip_defaults():
    """(vmem_limit_bytes, multi_tensorcore) per TPU generation."""
    kind = ""
    try:
        kind = jax.devices()[0].device_kind.lower()
    except Exception:
        pass
    if "v7" in kind:
        return 40 * 1024 * 1024, True          # 64 MiB VMEM per TC on v7x -> stay well under
    if "v6" in kind:
        return 64 * 1024 * 1024, False         # single TC, 128 MiB physical VMEM
    if "v5e" in kind or "v5 lite" in kind or "v5lite" in kind:
        return 64 * 1024 * 1024, False         # single TC, raise past the 16 MiB default
    return 32 * 1024 * 1024, True              # unknown / megacore (v4, v5p): conservative


def _make_kernel(C, H, W, NB, roll_sign):
    HW = H * W

    def shl(v, k):
        # circular lane shift-left: result[..., p] = v[..., (p + k) % HW]
        k = k % HW
        if k == 0:
            return v
        amt = (-k * roll_sign) % HW
        return pltpu.roll(v, amt, axis=1)

    def kernel(w_ref, msk_ref, x_ref, o_ref):
        f32 = jnp.float32

        # ---- channel mean / max (VPU, two independent accumulation chains) ----
        v0 = x_ref[:, 0, :].astype(f32)
        if C >= 2:
            v1 = x_ref[:, 1, :].astype(f32)
            s0, s1, m0, m1 = v0, v1, v0, v1
            # TODO(synk): for very large C switch to a chunked lax.fori_loop or a C grid
            # axis ("arbitrary") with partial sum/max in scratch to bound code size / VMEM.
            for c in range(2, C):
                v = x_ref[:, c, :].astype(f32)
                if c & 1:
                    s1 = s1 + v
                    m1 = jnp.maximum(m1, v)
                else:
                    s0 = s0 + v
                    m0 = jnp.maximum(m0, v)
            ssum = s0 + s1
            mx = jnp.maximum(m0, m1)
        else:
            ssum, mx = v0, v0
        avg = ssum * (1.0 / C)

        # ---- stage 1: row-shifted (dy) maps; circular wrap killed by row masks ----
        sa, sm = [], []
        for dy in range(KSIZE):
            a = shl(avg, (dy - PAD) * W)
            m = shl(mx, (dy - PAD) * W)
            if dy != PAD:                                  # dy == 3 -> all-ones mask
                rm = jnp.broadcast_to(msk_ref[dy:dy + 1, :], (NB, HW))
                a = a * rm
                m = m * rm
            sa.append(a)
            sm.append(m)

        # ---- stage 2: 2*49 scalar MACs into 7 independent per-dx partials (ILP) ----
        pre = [None] * KSIZE
        for dy in range(KSIZE):
            a, m = sa[dy], sm[dy]
            for dx in range(KSIZE):
                t = (w_ref[dy * KSIZE + dx] * a
                     + w_ref[KSIZE * KSIZE + dy * KSIZE + dx] * m)
                pre[dx] = t if pre[dx] is None else pre[dx] + t

        # ---- stage 3: dx shifts (roll commutes with the dy-sum), one mask mul per dx,
        #      pairwise tree reduction, bias, sigmoid (EUP) ----
        # TODO(synk): for large H*W the dx contraction could be offloaded to the MXU via a
        # banded (W+6, W) weight matmul; the MXU is idle in this formulation.
        terms = []
        for dx in range(KSIZE):
            t = shl(pre[dx], dx - PAD)
            if dx != PAD:                                  # dx == 3 -> all-ones mask
                t = t * msk_ref[KSIZE + dx:KSIZE + dx + 1, :]
            terms.append(t)
        while len(terms) > 1:
            nxt = [terms[i] + terms[i + 1] for i in range(0, len(terms) - 1, 2)]
            if len(terms) & 1:
                nxt.append(terms[-1])
            terms = nxt
        acc = terms[0] + w_ref[2 * KSIZE * KSIZE]
        o_ref[:, :] = jax.nn.sigmoid(acc).astype(o_ref.dtype)

    return kernel


def spatial_attention(x, weight, bias):
    """x: (N, C, H, W). weight: (1, 2, 7, 7). bias: (1,). Returns (N, 1, H, W) in x.dtype."""
    N, C, H, W = x.shape
    HW = H * W
    vmem_limit, multi_tc = _chip_defaults()
    roll_sign = _roll_sign()

    # --- batch-block size: VMEM-budgeted, generation-aware, sublane-friendly output blocks ---
    itemsize = x.dtype.itemsize
    per_nb = 2 * C * HW * itemsize + 2 * HW * itemsize + 28 * HW * 4   # in/out dbuf + live f32 maps
    budget_nb = max(1, int(vmem_limit * 0.6) // per_nb)
    if N <= 8:
        NB = N                                  # single block: output block == full batch dim
    else:
        NB = budget_nb
        if multi_tc and N >= 16:
            NB = min(NB, N // 2)                # >=2 grid steps so both TensorCores get work
        if NB >= N:
            NB = N
        else:
            NB = max(8, (min(NB, N) // 8) * 8)  # keep output blocks sublane-aligned
    n_blocks = -(-N // NB)
    NPAD = n_blocks * NB
    # TODO(synk): a single batch element with huge C*H*W can still exceed the VMEM budget;
    # that case needs an extra "arbitrary" grid axis over C (and/or spatial tiles).

    xflat = x.reshape(N, C, HW)                 # free contiguous reshape; keeps input dtype
    if NPAD != N:
        xflat = jnp.pad(xflat, ((0, NPAD - N), (0, 0), (0, 0)))

    # Conv params flattened for SMEM: 49 avg taps, 49 max taps, bias.
    wflat = jnp.concatenate(
        [weight[0, 0].reshape(-1), weight[0, 1].reshape(-1), bias.reshape(-1)]
    ).astype(jnp.float32)                                   # (99,)

    # Host-built validity masks: rows 0..6 = per-dy row masks, rows 7..13 = per-dx column masks.
    yrow = np.arange(HW) // W
    xcol = np.arange(HW) % W
    rmask = np.stack([((yrow + dy - PAD >= 0) & (yrow + dy - PAD < H)) for dy in range(KSIZE)])
    cmask = np.stack([((xcol + dx - PAD >= 0) & (xcol + dx - PAD < W)) for dx in range(KSIZE)])
    masks = jnp.asarray(np.concatenate([rmask, cmask], axis=0).astype(np.float32))   # (14, HW)

    kernel = _make_kernel(C, H, W, NB, roll_sign)
    out = pl.pallas_call(
        kernel,
        out_shape=jax.ShapeDtypeStruct((NPAD, HW), x.dtype),
        grid=(n_blocks,),
        in_specs=[
            pl.BlockSpec(memory_space=pltpu.MemorySpace.SMEM),        # conv weights + bias
            pl.BlockSpec((2 * KSIZE, HW), lambda n: (0, 0)),          # masks (constant block)
            pl.BlockSpec((NB, C, HW), lambda n: (n, 0, 0)),           # x batch block (lane-dense)
        ],
        out_specs=pl.BlockSpec((NB, HW), lambda n: (n, 0)),           # 2-D, sublane/lane-dense
        compiler_params=pltpu.CompilerParams(
            dimension_semantics=("parallel",),
            vmem_limit_bytes=vmem_limit,
        ),
    )(wflat, masks, xflat)
    return out[:N].reshape(N, 1, H, W)


def _reference(x, weight, bias):
    avg = jnp.mean(x, axis=1, keepdims=True)
    mx = jnp.max(x, axis=1, keepdims=True)
    feat = jnp.concatenate([avg, mx], axis=1)
    out = jax.lax.conv_general_dilated(
        feat, weight, window_strides=(1, 1), padding=[(PAD, PAD), (PAD, PAD)],
        dimension_numbers=("NCHW", "OIHW", "NCHW"))
    return jax.nn.sigmoid(out + bias.reshape(1, 1, 1, 1))


if __name__ == "__main__":
    key = jax.random.PRNGKey(0)
    kx, kw, kb = jax.random.split(key, 3)
    N, C, H, W = 2, 4, 16, 16
    x = jax.random.normal(kx, (N, C, H, W), dtype=jnp.float32)

    # Deterministic synthetic Conv2d(2 -> 1, k=7) params (PyTorch-style uniform fan-in init).
    fan_in = 2 * KSIZE * KSIZE
    bound = 1.0 / np.sqrt(fan_in)
    weight = jax.random.uniform(kw, (1, 2, KSIZE, KSIZE), jnp.float32, -bound, bound)
    bias = jax.random.uniform(kb, (1,), jnp.float32, -bound, bound)

    out = jax.block_until_ready(spatial_attention(x, weight, bias))
    ref = _reference(x, weight, bias)
    assert out.shape == (N, 1, H, W)
    np.testing.assert_allclose(np.asarray(out), np.asarray(ref), rtol=1e-5, atol=1e-5)
    print("KERNEL_OK")
</pallas_src>

<mosaic_0001>
module attributes {stable_mosaic.version = 11 : i64} {
  func.func @probe(%arg0: memref<8x128xf32, #tpu.memory_space<vmem>>, %arg1: memref<8x128xf32, #tpu.memory_space<vmem>>) attributes {dimension_semantics = [], scalar_prefetch = 0 : i64, scratch_operands = 0 : i64, tpu.core_type = #tpu.core_type<tc>} {
    %c0 = arith.constant 0 : index
    %c0_0 = arith.constant 0 : index
    %0 = vector.load %arg0[%c0, %c0_0] : memref<8x128xf32, #tpu.memory_space<vmem>>, vector<8x128xf32>
    %c1_i32 = arith.constant 1 : i32
    %1 = tpu.dynamic_rotate %0 by %c1_i32 dim 1 : vector<8x128xf32>, i32 -> vector<8x128xf32>
    %c0_1 = arith.constant 0 : index
    %c0_2 = arith.constant 0 : index
    %2 = vector.load %arg1[%c0_1, %c0_2] : memref<8x128xf32, #tpu.memory_space<vmem>>, vector<8x128xf32>
    tpu.vector_store %arg1[%c0_1, %c0_2], %1 {strides = array<i32>} : memref<8x128xf32, #tpu.memory_space<vmem>>, vector<8x128xf32>,
    return
  }
}

module attributes {stable_mosaic.version = 11 : i64} {
  func.func @kernel(%arg0: i32, %arg1: memref<99xf32, #tpu.memory_space<smem>>, %arg2: memref<14x256xf32, #tpu.memory_space<vmem>>, %arg3: memref<2x4x256xf32, #tpu.memory_space<vmem>>, %arg4: memref<2x256xf32, #tpu.memory_space<vmem>>) attributes {dimension_semantics = [#tpu.dimension_semantics<parallel>], iteration_bounds = array<i64: 1>, scalar_prefetch = 0 : i64, scratch_operands = 0 : i64, tpu.core_type = #tpu.core_type<tc>, window_params = [{transform_indices = @transform_0, window_bounds = array<i64: 99>}, {pipeline_mode = #tpu.pipeline_mode<synchronous>, transform_indices = @transform_1, window_bounds = array<i64: 14, 256>}, {transform_indices = @transform_2, window_bounds = array<i64: 2, 4, 256>}, {transform_indices = @transform_3, window_bounds = array<i64: 2, 256>}]} {
    %c0 = arith.constant 0 : index
    %c0_0 = arith.constant 0 : index
    %c0_1 = arith.constant 0 : index
    %0 = vector.load %arg3[%c0, %c0_0, %c0_1] : memref<2x4x256xf32, #tpu.memory_space<vmem>>, vector<2x1x256xf32>
    %1 = vector.shape_cast %0 : vector<2x1x256xf32> to vector<2x256xf32>
    %c0_2 = arith.constant 0 : index
    %c1 = arith.constant 1 : index
    %c0_3 = arith.constant 0 : index
    %2 = vector.load %arg3[%c0_2, %c1, %c0_3] : memref<2x4x256xf32, #tpu.memory_space<vmem>>, vector<2x1x256xf32>
    %3 = vector.shape_cast %2 : vector<2x1x256xf32> to vector<2x256xf32>
    %c0_4 = arith.constant 0 : index
    %c2 = arith.constant 2 : index
    %c0_5 = arith.constant 0 : index
    %4 = vector.load %arg3[%c0_4, %c2, %c0_5] : memref<2x4x256xf32, #tpu.memory_space<vmem>>, vector<2x1x256xf32>
    %5 = vector.shape_cast %4 : vector<2x1x256xf32> to vector<2x256xf32>
    %6 = arith.addf %1, %5 : vector<2x256xf32>
    %7 = arith.maximumf %1, %5 : vector<2x256xf32>
    %c0_6 = arith.constant 0 : index
    %c3 = arith.constant 3 : index
    %c0_7 = arith.constant 0 : index
    %8 = vector.load %arg3[%c0_6, %c3, %c0_7] : memref<2x4x256xf32, #tpu.memory_space<vmem>>, vector<2x1x256xf32>
    %9 = vector.shape_cast %8 : vector<2x1x256xf32> to vector<2x256xf32>
    %10 = arith.addf %3, %9 : vector<2x256xf32>
    %11 = arith.maximumf %3, %9 : vector<2x256xf32>
    %12 = arith.addf %6, %10 : vector<2x256xf32>
    %13 = arith.maximumf %7, %11 : vector<2x256xf32>
    %cst = arith.constant 2.500000e-01 : f32
    %14 = vector.broadcast %cst : f32 to vector<2x256xf32>
    %15 = arith.mulf %12, %14 : vector<2x256xf32>
    %c48_i32 = arith.constant 48 : i32
    %16 = tpu.dynamic_rotate %15 by %c48_i32 dim 1 : vector<2x256xf32>, i32 -> vector<2x256xf32>
    %c48_i32_8 = arith.constant 48 : i32
    %17 = tpu.dynamic_rotate %13 by %c48_i32_8 dim 1 : vector<2x256xf32>, i32 -> vector<2x256xf32>
    %c0_9 = arith.constant 0 : index
    %c0_10 = arith.constant 0 : index
    %18 = vector.load %arg2[%c0_9, %c0_10] : memref<14x256xf32, #tpu.memory_space<vmem>>, vector<1x256xf32>
    %19 = vector.shape_cast %18 : vector<1x256xf32> to vector<1x256xf32>
    %20 = vector.broadcast %19 : vector<1x256xf32> to vector<2x256xf32>
    %21 = arith.mulf %16, %20 : vector<2x256xf32>
    %22 = arith.mulf %17, %20 : vector<2x256xf32>
    %c32_i32 = arith.constant 32 : i32
    %23 = tpu.dynamic_rotate %15 by %c32_i32 dim 1 : vector<2x256xf32>, i32 -> vector<2x256xf32>
    %c32_i32_11 = arith.constant 32 : i32
    %24 = tpu.dynamic_rotate %13 by %c32_i32_11 dim 1 : vector<2x256xf32>, i32 -> vector<2x256xf32>
    %c1_12 = arith.constant 1 : index
    %c0_13 = arith.constant 0 : index
    %25 = vector.load %arg2[%c1_12, %c0_13] : memref<14x256xf32, #tpu.memory_space<vmem>>, vector<1x256xf32>
    %26 = vector.shape_cast %25 : vector<1x256xf32> to vector<1x256xf32>
    %27 = vector.broadcast %26 : vector<1x256xf32> to vector<2x256xf32>
    %28 = arith.mulf %23, %27 : vector<2x256xf32>
    %29 = arith.mulf %24, %27 : vector<2x256xf32>
    %c16_i32 = arith.constant 16 : i32
    %30 = tpu.dynamic_rotate %15 by %c16_i32 dim 1 : vector<2x256xf32>, i32 -> vector<2x256xf32>
    %c16_i32_14 = arith.constant 16 : i32
    %31 = tpu.dynamic_rotate %13 by %c16_i32_14 dim 1 : vector<2x256xf32>, i32 -> vector<2x256xf32>
    %c2_15 = arith.constant 2 : index
    %c0_16 = arith.constant 0 : index
    %32 = vector.load %arg2[%c2_15, %c0_16] : memref<14x256xf32, #tpu.memory_space<vmem>>, vector<1x256xf32>
    %33 = vector.shape_cast %32 : vector<1x256xf32> to vector<1x256xf32>
    %34 = vector.broadcast %33 : vector<1x256xf32> to vector<2x256xf32>
    %35 = arith.mulf %30, %34 : vector<2x256xf32>
    %36 = arith.mulf %31, %34 : vector<2x256xf32>
    %c240_i32 = arith.constant 240 : i32
    %37 = tpu.dynamic_rotate %15 by %c240_i32 dim 1 : vector<2x256xf32>, i32 -> vector<2x256xf32>
    %c240_i32_17 = arith.constant 240 : i32
    %38 = tpu.dynamic_rotate %13 by %c240_i32_17 dim 1 : vector<2x256xf32>, i32 -> vector<2x256xf32>
    %c4 = arith.constant 4 : index
    %c0_18 = arith.constant 0 : index
    %39 = vector.load %arg2[%c4, %c0_18] : memref<14x256xf32, #tpu.memory_space<vmem>>, vector<1x256xf32>
    %40 = vector.shape_cast %39 : vector<1x256xf32> to vector<1x256xf32>
    %41 = vector.broadcast %40 : vector<1x256xf32> to vector<2x256xf32>
    %42 = arith.mulf %37, %41 : vector<2x256xf32>
    %43 = arith.mulf %38, %41 : vector<2x256xf32>
    %c224_i32 = arith.constant 224 : i32
    %44 = tpu.dynamic_rotate %15 by %c224_i32 dim 1 : vector<2x256xf32>, i32 -> vector<2x256xf32>
    %c224_i32_19 = arith.constant 224 : i32
    %45 = tpu.dynamic_rotate %13 by %c224_i32_19 dim 1 : vector<2x256xf32>, i32 -> vector<2x256xf32>
    %c5 = arith.constant 5 : index
    %c0_20 = arith.constant 0 : index
    %46 = vector.load %arg2[%c5, %c0_20] : memref<14x256xf32, #tpu.memory_space<vmem>>, vector<1x256xf32>
    %47 = vector.shape_cast %46 : vector<1x256xf32> to vector<1x256xf32>
    %48 = vector.broadcast %47 : vector<1x256xf32> to vector<2x256xf32>
    %49 = arith.mulf %44, %48 : vector<2x256xf32>
    %50 = arith.mulf %45, %48 : vector<2x256xf32>
    %c208_i32 = arith.constant 208 : i32
    %51 = tpu.dynamic_rotate %15 by %c208_i32 dim 1 : vector<2x256xf32>, i32 -> vector<2x256xf32>
    %c208_i32_21 = arith.constant 208 : i32
    %52 = tpu.dynamic_rotate %13 by %c208_i32_21 dim 1 : vector<2x256xf32>, i32 -> vector<2x256xf32>
    %c6 = arith.constant 6 : index
    %c0_22 = arith.constant 0 : index
    %53 = vector.load %arg2[%c6, %c0_22] : memref<14x256xf32, #tpu.memory_space<vmem>>, vector<1x256xf32>
    %54 = vector.shape_cast %53 : vector<1x256xf32> to vector<1x256xf32>
    %55 = vector.broadcast %54 : vector<1x256xf32> to vector<2x256xf32>
    %56 = arith.mulf %51, %55 : vector<2x256xf32>
    %57 = arith.mulf %52, %55 : vector<2x256xf32>
    %c0_23 = arith.constant 0 : index
    %58 = memref.load %arg1[%c0_23] : memref<99xf32, #tpu.memory_space<smem>>
    %59 = vector.broadcast %58 : f32 to vector<2x256xf32>
    %60 = arith.mulf %59, %21 : vector<2x256xf32>
    %c49 = arith.constant 49 : index
    %61 = memref.load %arg1[%c49] : memref<99xf32, #tpu.memory_space<smem>>
    %62 = vector.broadcast %61 : f32 to vector<2x256xf32>
    %63 = arith.mulf %62, %22 : vector<2x256xf32>
    %64 = arith.addf %60, %63 : vector<2x256xf32>
    %c1_24 = arith.constant 1 : index
    %65 = memref.load %arg1[%c1_24] : memref<99xf32, #tpu.memory_space<smem>>
    %66 = vector.broadcast %65 : f32 to vector<2x256xf32>
    %67 = arith.mulf %66, %21 : vector<2x256xf32>
    %c50 = arith.constant 50 : index
    %68 = memref.load %arg1[%c50] : memref<99xf32, #tpu.memory_space<smem>>
    %69 = vector.broadcast %68 : f32 to vector<2x256xf32>
    %70 = arith.mulf %69, %22 : vector<2x256xf32>
    %71 = arith.addf %67, %70 : vector<2x256xf32>
    %c2_25 = arith.constant 2 : index
    %72 = memref.load %arg1[%c2_25] : memref<99xf32, #tpu.memory_space<smem>>
    %73 = vector.broadcast %72 : f32 to vector<2x256xf32>
    %74 = arith.mulf %73, %21 : vector<2x256xf32>
    %c51 = arith.constant 51 : index
    %75 = memref.load %arg1[%c51] : memref<99xf32, #tpu.memory_space<smem>>
    %76 = vector.broadcast %75 : f32 to vector<2x256xf32>
    %77 = arith.mulf %76, %22 : vector<2x256xf32>
    %78 = arith.addf %74, %77 : vector<2x256xf32>
    %c3_26 = arith.constant 3 : index
    %79 = memref.load %arg1[%c3_26] : memref<99xf32, #tpu.memory_space<smem>>
    %80 = vector.broadcast %79 : f32 to vector<2x256xf32>
    %81 = arith.mulf %80, %21 : vector<2x256xf32>
    %c52 = arith.constant 52 : index
    %82 = memref.load %arg1[%c52] : memref<99xf32, #tpu.memory_space<smem>>
    %83 = vector.broadcast %82 : f32 to vector<2x256xf32>
    %84 = arith.mulf %83, %22 : vector<2x256xf32>
    %85 = arith.addf %81, %84 : vector<2x256xf32>
    %c4_27 = arith.constant 4 : index
    %86 = memref.load %arg1[%c4_27] : memref<99xf32, #tpu.memory_space<smem>>
    %87 = vector.broadcast %86 : f32 to vector<2x256xf32>
    %88 = arith.mulf %87, %21 : vector<2x256xf32>
    %c53 = arith.constant 53 : index
    %89 = memref.load %arg1[%c53] : memref<99xf32, #tpu.memory_space<smem>>
    %90 = vector.broadcast %89 : f32 to vector<2x256xf32>
    %91 = arith.mulf %90, %22 : vector<2x256xf32>
    %92 = arith.addf %88, %91 : vector<2x256xf32>
    %c5_28 = arith.constant 5 : index
    %93 = memref.load %arg1[%c5_28] : memref<99xf32, #tpu.memory_space<smem>>
    %94 = vector.broadcast %93 : f32 to vector<2x256xf32>
    %95 = arith.mulf %94, %21 : vector<2x256xf32>
    %c54 = arith.constant 54 : index
    %96 = memref.load %arg1[%c54] : memref<99xf32, #tpu.memory_space<smem>>
    %97 = vector.broadcast %96 : f32 to vector<2x256xf32>
    %98 = arith.mulf %97, %22 : vector<2x256xf32>
    %99 = arith.addf %95, %98 : vector<2x256xf32>
    %c6_29 = arith.constant 6 : index
    %100 = memref.load %arg1[%c6_29] : memref<99xf32, #tpu.memory_space<smem>>
    %101 = vector.broadcast %100 : f32 to vector<2x256xf32>
    %102 = arith.mulf %101, %21 : vector<2x256xf32>
    %c55 = arith.constant 55 : index
    %103 = memref.load %arg1[%c55] : memref<99xf32, #tpu.memory_space<smem>>
    %104 = vector.broadcast %103 : f32 to vector<2x256xf32>
    %105 = arith.mulf %104, %22 : vector<2x256xf32>
    %106 = arith.addf %102, %105 : vector<2x256xf32>
    %c7 = arith.constant 7 : index
    %107 = memref.load %arg1[%c7] : memref<99xf32, #tpu.memory_space<smem>>
    %108 = vector.broadcast %107 : f32 to vector<2x256xf32>
    %109 = arith.mulf %108, %28 : vector<2x256xf32>
    %c56 = arith.constant 56 : index
    %110 = memref.load %arg1[%c56] : memref<99xf32, #tpu.memory_space<smem>>
    %111 = vector.broadcast %110 : f32 to vector<2x256xf32>
    %112 = arith.mulf %111, %29 : vector<2x256xf32>
    %113 = arith.addf %109, %112 : vector<2x256xf32>
    %114 = arith.addf %64, %113 : vector<2x256xf32>
    %c8 = arith.constant 8 : index
    %115 = memref.load %arg1[%c8] : memref<99xf32, #tpu.memory_space<smem>>
    %116 = vector.broadcast %115 : f32 to vector<2x256xf32>
    %117 = arith.mulf %116, %28 : vector<2x256xf32>
    %c57 = arith.constant 57 : index
    %118 = memref.load %arg1[%c57] : memref<99xf32, #tpu.memory_space<smem>>
    %119 = vector.broadcast %118 : f32 to vector<2x256xf32>
    %120 = arith.mulf %119, %29 : vector<2x256xf32>
    %121 = arith.addf %117, %120 : vector<2x256xf32>
    %122 = arith.addf %71, %121 : vector<2x256xf32>
    %c9 = arith.constant 9 : index
    %123 = memref.load %arg1[%c9] : memref<99xf32, #tpu.memory_space<smem>>
    %124 = vector.broadcast %123 : f32 to vector<2x256xf32>
    %125 = arith.mulf %124, %28 : vector<2x256xf32>
    %c58 = arith.constant 58 : index
    %126 = memref.load %arg1[%c58] : memref<99xf32, #tpu.memory_space<smem>>
    %127 = vector.broadcast %126 : f32 to vector<2x256xf32>
    %128 = arith.mulf %127, %29 : vector<2x256xf32>
    %129 = arith.addf %125, %128 : vector<2x256xf32>
    %130 = arith.addf %78, %129 : vector<2x256xf32>
    %c10 = arith.constant 10 : index
    %131 = memref.load %arg1[%c10] : memref<99xf32, #tpu.memory_space<smem>>
    %132 = vector.broadcast %131 : f32 to vector<2x256xf32>
    %133 = arith.mulf %132, %28 : vector<2x256xf32>
    %c59 = arith.constant 59 : index
    %134 = memref.load %arg1[%c59] : memref<99xf32, #tpu.memory_space<smem>>
    %135 = vector.broadcast %134 : f32 to vector<2x256xf32>
    %136 = arith.mulf %135, %29 : vector<2x256xf32>
    %137 = arith.addf %133, %136 : vector<2x256xf32>
    %138 = arith.addf %85, %137 : vector<2x256xf32>
    %c11 = arith.constant 11 : index
    %139 = memref.load %arg1[%c11] : memref<99xf32, #tpu.memory_space<smem>>
    %140 = vector.broadcast %139 : f32 to vector<2x256xf32>
    %141 = arith.mulf %140, %28 : vector<2x256xf32>
    %c60 = arith.constant 60 : index
    %142 = memref.load %arg1[%c60] : memref<99xf32, #tpu.memory_space<smem>>
    %143 = vector.broadcast %142 : f32 to vector<2x256xf32>
    %144 = arith.mulf %143, %29 : vector<2x256xf32>
    %145 = arith.addf %141, %144 : vector<2x256xf32>
    %146 = arith.addf %92, %145 : vector<2x256xf32>
    %c12 = arith.constant 12 : index
    %147 = memref.load %arg1[%c12] : memref<99xf32, #tpu.memory_space<smem>>
    %148 = vector.broadcast %147 : f32 to vector<2x256xf32>
    %149 = arith.mulf %148, %28 : vector<2x256xf32>
    %c61 = arith.constant 61 : index
    %150 = memref.load %arg1[%c61] : memref<99xf32, #tpu.memory_space<smem>>
    %151 = vector.broadcast %150 : f32 to vector<2x256xf32>
    %152 = arith.mulf %151, %29 : vector<2x256xf32>
    %153 = arith.addf %149, %152 : vector<2x256xf32>
    %154 = arith.addf %99, %153 : vector<2x256xf32>
    %c13 = arith.constant 13 : index
    %155 = memref.load %arg1[%c13] : memref<99xf32, #tpu.memory_space<smem>>
    %156 = vector.broadcast %155 : f32 to vector<2x256xf32>
    %157 = arith.mulf %156, %28 : vector<2x256xf32>
    %c62 = arith.constant 62 : index
    %158 = memref.load %arg1[%c62] : memref<99xf32, #tpu.memory_space<smem>>
    %159 = vector.broadcast %158 : f32 to vector<2x256xf32>
    %160 = arith.mulf %159, %29 : vector<2x256xf32>
    %161 = arith.addf %157, %160 : vector<2x256xf32>
    %162 = arith.addf %106, %161 : vector<2x256xf32>
    %c14 = arith.constant 14 : index
    %163 = memref.load %arg1[%c14] : memref<99xf32, #tpu.memory_space<smem>>
    %164 = vector.broadcast %163 : f32 to vector<2x256xf32>
    %165 = arith.mulf %164, %35 : vector<2x256xf32>
    %c63 = arith.constant 63 : index
    %166 = memref.load %arg1[%c63] : memref<99xf32, #tpu.memory_space<smem>>
    %167 = vector.broadcast %166 : f32 to vector<2x256xf32>
    %168 = arith.mulf %167, %36 : vector<2x256xf32>
    %169 = arith.addf %165, %168 : vector<2x256xf32>
    %170 = arith.addf %114, %169 : vector<2x256xf32>
    %c15 = arith.constant 15 : index
    %171 = memref.load %arg1[%c15] : memref<99xf32, #tpu.memory_space<smem>>
    %172 = vector.broadcast %171 : f32 to vector<2x256xf32>
    %173 = arith.mulf %172, %35 : vector<2x256xf32>
    %c64 = arith.constant 64 : index
    %174 = memref.load %arg1[%c64] : memref<99xf32, #tpu.memory_space<smem>>
    %175 = vector.broadcast %174 : f32 to vector<2x256xf32>
    %176 = arith.mulf %175, %36 : vector<2x256xf32>
    %177 = arith.addf %173, %176 : vector<2x256xf32>
    %178 = arith.addf %122, %177 : vector<2x256xf32>
    %c16 = arith.constant 16 : index
    %179 = memref.load %arg1[%c16] : memref<99xf32, #tpu.memory_space<smem>>
    %180 = vector.broadcast %179 : f32 to vector<2x256xf32>
    %181 = arith.mulf %180, %35 : vector<2x256xf32>
    %c65 = arith.constant 65 : index
    %182 = memref.load %arg1[%c65] : memref<99xf32, #tpu.memory_space<smem>>
    %183 = vector.broadcast %182 : f32 to vector<2x256xf32>
    %184 = arith.mulf %183, %36 : vector<2x256xf32>
    %185 = arith.addf %181, %184 : vector<2x256xf32>
    %186 = arith.addf %130, %185 : vector<2x256xf32>
    %c17 = arith.constant 17 : index
    %187 = memref.load %arg1[%c17] : memref<99xf32, #tpu.memory_space<smem>>
    %188 = vector.broadcast %187 : f32 to vector<2x256xf32>
    %189 = arith.mulf %188, %35 : vector<2x256xf32>
    %c66 = arith.constant 66 : index
    %190 = memref.load %arg1[%c66] : memref<99xf32, #tpu.memory_space<smem>>
    %191 = vector.broadcast %190 : f32 to vector<2x256xf32>
    %192 = arith.mulf %191, %36 : vector<2x256xf32>
    %193 = arith.addf %189, %192 : vector<2x256xf32>
    %194 = arith.addf %138, %193 : vector<2x256xf32>
    %c18 = arith.constant 18 : index
    %195 = memref.load %arg1[%c18] : memref<99xf32, #tpu.memory_space<smem>>
    %196 = vector.broadcast %195 : f32 to vector<2x256xf32>
    %197 = arith.mulf %196, %35 : vector<2x256xf32>
    %c67 = arith.constant 67 : index
    %198 = memref.load %arg1[%c67] : memref<99xf32, #tpu.memory_space<smem>>
    %199 = vector.broadcast %198 : f32 to vector<2x256xf32>
    %200 = arith.mulf %199, %36 : vector<2x256xf32>
    %201 = arith.addf %197, %200 : vector<2x256xf32>
    %202 = arith.addf %146, %201 : vector<2x256xf32>
    %c19 = arith.constant 19 : index
    %203 = memref.load %arg1[%c19] : memref<99xf32, #tpu.memory_space<smem>>
    %204 = vector.broadcast %203 : f32 to vector<2x256xf32>
    %205 = arith.mulf %204, %35 : vector<2x256xf32>
    %c68 = arith.constant 68 : index
    %206 = memref.load %arg1[%c68] : memref<99xf32, #tpu.memory_space<smem>>
    %207 = vector.broadcast %206 : f32 to vector<2x256xf32>
    %208 = arith.mulf %207, %36 : vector<2x256xf32>
    %209 = arith.addf %205, %208 : vector<2x256xf32>
    %210 = arith.addf %154, %209 : vector<2x256xf32>
    %c20 = arith.constant 20 : index
    %211 = memref.load %arg1[%c20] : memref<99xf32, #tpu.memory_space<smem>>
    %212 = vector.broadcast %211 : f32 to vector<2x256xf32>
    %213 = arith.mulf %212, %35 : vector<2x256xf32>
    %c69 = arith.constant 69 : index
    %214 = memref.load %arg1[%c69] : memref<99xf32, #tpu.memory_space<smem>>
    %215 = vector.broadcast %214 : f32 to vector<2x256xf32>
    %216 = arith.mulf %215, %36 : vector<2x256xf32>
    %217 = arith.addf %213, %216 : vector<2x256xf32>
    %218 = arith.addf %162, %217 : vector<2x256xf32>
    %c21 = arith.constant 21 : index
    %219 = memref.load %arg1[%c21] : memref<99xf32, #tpu.memory_space<smem>>
    %220 = vector.broadcast %219 : f32 to vector<2x256xf32>
    %221 = arith.mulf %220, %15 : vector<2x256xf32>
    %c70 = arith.constant 70 : index
    %222 = memref.load %arg1[%c70] : memref<99xf32, #tpu.memory_space<smem>>
    %223 = vector.broadcast %222 : f32 to vector<2x256xf32>
    %224 = arith.mulf %223, %13 : vector<2x256xf32>
    %225 = arith.addf %221, %224 : vector<2x256xf32>
    %226 = arith.addf %170, %225 : vector<2x256xf32>
    %c22 = arith.constant 22 : index
    %227 = memref.load %arg1[%c22] : memref<99xf32, #tpu.memory_space<smem>>
    %228 = vector.broadcast %227 : f32 to vector<2x256xf32>
    %229 = arith.mulf %228, %15 : vector<2x256xf32>
    %c71 = arith.constant 71 : index
    %230 = memref.load %arg1[%c71] : memref<99xf32, #tpu.memory_space<smem>>
    %231 = vector.broadcast %230 : f32 to vector<2x256xf32>
    %232 = arith.mulf %231, %13 : vector<2x256xf32>
    %233 = arith.addf %229, %232 : vector<2x256xf32>
    %234 = arith.addf %178, %233 : vector<2x256xf32>
    %c23 = arith.constant 23 : index
    %235 = memref.load %arg1[%c23] : memref<99xf32, #tpu.memory_space<smem>>
    %236 = vector.broadcast %235 : f32 to vector<2x256xf32>
    %237 = arith.mulf %236, %15 : vector<2x256xf32>
    %c72 = arith.constant 72 : index
    %238 = memref.load %arg1[%c72] : memref<99xf32, #tpu.memory_space<smem>>
    %239 = vector.broadcast %238 : f32 to vector<2x256xf32>
    %240 = arith.mulf %239, %13 : vector<2x256xf32>
    %241 = arith.addf %237, %240 : vector<2x256xf32>
    %242 = arith.addf %186, %241 : vector<2x256xf32>
    %c24 = arith.constant 24 : index
    %243 = memref.load %arg1[%c24] : memref<99xf32, #tpu.memory_space<smem>>
    %244 = vector.broadcast %243 : f32 to vector<2x256xf32>
    %245 = arith.mulf %244, %15 : vector<2x256xf32>
    %c73 = arith.constant 73 : index
    %246 = memref.load %arg1[%c73] : memref<99xf32, #tpu.memory_space<smem>>
    %247 = vector.broadcast %246 : f32 to vector<2x256xf32>
    %248 = arith.mulf %247, %13 : vector<2x256xf32>
    %249 = arith.addf %245, %248 : vector<2x256xf32>
    %250 = arith.addf %194, %249 : vector<2x256xf32>
    %c25 = arith.constant 25 : index
    %251 = memref.load %arg1[%c25] : memref<99xf32, #tpu.memory_space<smem>>
    %252 = vector.broadcast %251 : f32 to vector<2x256xf32>
    %253 = arith.mulf %252, %15 : vector<2x256xf32>
    %c74 = arith.constant 74 : index
    %254 = memref.load %arg1[%c74] : memref<99xf32, #tpu.memory_space<smem>>
    %255 = vector.broadcast %254 : f32 to vector<2x256xf32>
    %256 = arith.mulf %255, %13 : vector<2x256xf32>
    %257 = arith.addf %253, %256 : vector<2x256xf32>
    %258 = arith.addf %202, %257 : vector<2x256xf32>
    %c26 = arith.constant 26 : index
    %259 = memref.load %arg1[%c26] : memref<99xf32, #tpu.memory_space<smem>>
    %260 = vector.broadcast %259 : f32 to vector<2x256xf32>
    %261 = arith.mulf %260, %15 : vector<2x256xf32>
    %c75 = arith.constant 75 : index
    %262 = memref.load %arg1[%c75] : memref<99xf32, #tpu.memory_space<smem>>
    %263 = vector.broadcast %262 : f32 to vector<2x256xf32>
    %264 = arith.mulf %263, %13 : vector<2x256xf32>
    %265 = arith.addf %261, %264 : vector<2x256xf32>
    %266 = arith.addf %210, %265 : vector<2x256xf32>
    %c27 = arith.constant 27 : index
    %267 = memref.load %arg1[%c27] : memref<99xf32, #tpu.memory_space<smem>>
    %268 = vector.broadcast %267 : f32 to vector<2x256xf32>
    %269 = arith.mulf %268, %15 : vector<2x256xf32>
    %c76 = arith.constant 76 : index
    %270 = memref.load %arg1[%c76] : memref<99xf32, #tpu.memory_space<smem>>
    %271 = vector.broadcast %270 : f32 to vector<2x256xf32>
    %272 = arith.mulf %271, %13 : vector<2x256xf32>
    %273 = arith.addf %269, %272 : vector<2x256xf32>
    %274 = arith.addf %218, %273 : vector<2x256xf32>
    %c28 = arith.constant 28 : index
    %275 = memref.load %arg1[%c28] : memref<99xf32, #tpu.memory_space<smem>>
    %276 = vector.broadcast %275 : f32 to vector<2x256xf32>
    %277 = arith.mulf %276, %42 : vector<2x256xf32>
    %c77 = arith.constant 77 : index
    %278 = memref.load %arg1[%c77] : memref<99xf32, #tpu.memory_space<smem>>
    %279 = vector.broadcast %278 : f32 to vector<2x256xf32>
    %280 = arith.mulf %279, %43 : vector<2x256xf32>
    %281 = arith.addf %277, %280 : vector<2x256xf32>
    %282 = arith.addf %226, %281 : vector<2x256xf32>
    %c29 = arith.constant 29 : index
    %283 = memref.load %arg1[%c29] : memref<99xf32, #tpu.memory_space<smem>>
    %284 = vector.broadcast %283 : f32 to vector<2x256xf32>
    %285 = arith.mulf %284, %42 : vector<2x256xf32>
    %c78 = arith.constant 78 : index
    %286 = memref.load %arg1[%c78] : memref<99xf32, #tpu.memory_space<smem>>
    %287 = vector.broadcast %286 : f32 to vector<2x256xf32>
    %288 = arith.mulf %287, %43 : vector<2x256xf32>
    %289 = arith.addf %285, %288 : vector<2x256xf32>
    %290 = arith.addf %234, %289 : vector<2x256xf32>
    %c30 = arith.constant 30 : index
    %291 = memref.load %arg1[%c30] : memref<99xf32, #tpu.memory_space<smem>>
    %292 = vector.broadcast %291 : f32 to vector<2x256xf32>
    %293 = arith.mulf %292, %42 : vector<2x256xf32>
    %c79 = arith.constant 79 : index
    %294 = memref.load %arg1[%c79] : memref<99xf32, #tpu.memory_space<smem>>
    %295 = vector.broadcast %294 : f32 to vector<2x256xf32>
    %296 = arith.mulf %295, %43 : vector<2x256xf32>
    %297 = arith.addf %293, %296 : vector<2x256xf32>
    %298 = arith.addf %242, %297 : vector<2x256xf32>
    %c31 = arith.constant 31 : index
    %299 = memref.load %arg1[%c31] : memref<99xf32, #tpu.memory_space<smem>>
    %300 = vector.broadcast %299 : f32 to vector<2x256xf32>
    %301 = arith.mulf %300, %42 : vector<2x256xf32>
    %c80 = arith.constant 80 : index
    %302 = memref.load %arg1[%c80] : memref<99xf32, #tpu.memory_space<smem>>
    %303 = vector.broadcast %302 : f32 to vector<2x256xf32>
    %304 = arith.mulf %303, %43 : vector<2x256xf32>
    %305 = arith.addf %301, %304 : vector<2x256xf32>
    %306 = arith.addf %250, %305 : vector<2x256xf32>
    %c32 = arith.constant 32 : index
    %307 = memref.load %arg1[%c32] : memref<99xf32, #tpu.memory_space<smem>>
    %308 = vector.broadcast %307 : f32 to vector<2x256xf32>
    %309 = arith.mulf %308, %42 : vector<2x256xf32>
    %c81 = arith.constant 81 : index
    %310 = memref.load %arg1[%c81] : memref<99xf32, #tpu.memory_space<smem>>
    %311 = vector.broadcast %310 : f32 to vector<2x256xf32>
    %312 = arith.mulf %311, %43 : vector<2x256xf32>
    %313 = arith.addf %309, %312 : vector<2x256xf32>
    %314 = arith.addf %258, %313 : vector<2x256xf32>
    %c33 = arith.constant 33 : index
    %315 = memref.load %arg1[%c33] : memref<99xf32, #tpu.memory_space<smem>>
    %316 = vector.broadcast %315 : f32 to vector<2x256xf32>
    %317 = arith.mulf %316, %42 : vector<2x256xf32>
    %c82 = arith.constant 82 : index
    %318 = memref.load %arg1[%c82] : memref<99xf32, #tpu.memory_space<smem>>
    %319 = vector.broadcast %318 : f32 to vector<2x256xf32>
    %320 = arith.mulf %319, %43 : vector<2x256xf32>
    %321 = arith.addf %317, %320 : vector<2x256xf32>
    %322 = arith.addf %266, %321 : vector<2x256xf32>
    %c34 = arith.constant 34 : index
    %323 = memref.load %arg1[%c34] : memref<99xf32, #tpu.memory_space<smem>>
    %324 = vector.broadcast %323 : f32 to vector<2x256xf32>
    %325 = arith.mulf %324, %42 : vector<2x256xf32>
    %c83 = arith.constant 83 : index
    %326 = memref.load %arg1[%c83] : memref<99xf32, #tpu.memory_space<smem>>
    %327 = vector.broadcast %326 : f32 to vector<2x256xf32>
    %328 = arith.mulf %327, %43 : vector<2x256xf32>
    %329 = arith.addf %325, %328 : vector<2x256xf32>
    %330 = arith.addf %274, %329 : vector<2x256xf32>
    %c35 = arith.constant 35 : index
    %331 = memref.load %arg1[%c35] : memref<99xf32, #tpu.memory_space<smem>>
    %332 = vector.broadcast %331 : f32 to vector<2x256xf32>
    %333 = arith.mulf %332, %49 : vector<2x256xf32>
    %c84 = arith.constant 84 : index
    %334 = memref.load %arg1[%c84] : memref<99xf32, #tpu.memory_space<smem>>
    %335 = vector.broadcast %334 : f32 to vector<2x256xf32>
    %336 = arith.mulf %335, %50 : vector<2x256xf32>
    %337 = arith.addf %333, %336 : vector<2x256xf32>
    %338 = arith.addf %282, %337 : vector<2x256xf32>
    %c36 = arith.constant 36 : index
    %339 = memref.load %arg1[%c36] : memref<99xf32, #tpu.memory_space<smem>>
    %340 = vector.broadcast %339 : f32 to vector<2x256xf32>
    %341 = arith.mulf %340, %49 : vector<2x256xf32>
    %c85 = arith.constant 85 : index
    %342 = memref.load %arg1[%c85] : memref<99xf32, #tpu.memory_space<smem>>
    %343 = vector.broadcast %342 : f32 to vector<2x256xf32>
    %344 = arith.mulf %343, %50 : vector<2x256xf32>
    %345 = arith.addf %341, %344 : vector<2x256xf32>
    %346 = arith.addf %290, %345 : vector<2x256xf32>
    %c37 = arith.constant 37 : index
    %347 = memref.load %arg1[%c37] : memref<99xf32, #tpu.memory_space<smem>>
    %348 = vector.broadcast %347 : f32 to vector<2x256xf32>
    %349 = arith.mulf %348, %49 : vector<2x256xf32>
    %c86 = arith.constant 86 : index
    %350 = memref.load %arg1[%c86] : memref<99xf32, #tpu.memory_space<smem>>
    %351 = vector.broadcast %350 : f32 to vector<2x256xf32>
    %352 = arith.mulf %351, %50 : vector<2x256xf32>
    %353 = arith.addf %349, %352 : vector<2x256xf32>
    %354 = arith.addf %298, %353 : vector<2x256xf32>
    %c38 = arith.constant 38 : index
    %355 = memref.load %arg1[%c38] : memref<99xf32, #tpu.memory_space<smem>>
    %356 = vector.broadcast %355 : f32 to vector<2x256xf32>
    %357 = arith.mulf %356, %49 : vector<2x256xf32>
    %c87 = arith.constant 87 : index
    %358 = memref.load %arg1[%c87] : memref<99xf32, #tpu.memory_space<smem>>
    %359 = vector.broadcast %358 : f32 to vector<2x256xf32>
    %360 = arith.mulf %359, %50 : vector<2x256xf32>
    %361 = arith.addf %357, %360 : vector<2x256xf32>
    %362 = arith.addf %306, %361 : vector<2x256xf32>
    %c39 = arith.constant 39 : index
    %363 = memref.load %arg1[%c39] : memref<99xf32, #tpu.memory_space<smem>>
    %364 = vector.broadcast %363 : f32 to vector<2x256xf32>
    %365 = arith.mulf %364, %49 : vector<2x256xf32>
    %c88 = arith.constant 88 : index
    %366 = memref.load %arg1[%c88] : memref<99xf32, #tpu.memory_space<smem>>
    %367 = vector.broadcast %366 : f32 to vector<2x256xf32>
    %368 = arith.mulf %367, %50 : vector<2x256xf32>
    %369 = arith.addf %365, %368 : vector<2x256xf32>
    %370 = arith.addf %314, %369 : vector<2x256xf32>
    %c40 = arith.constant 40 : index
    %371 = memref.load %arg1[%c40] : memref<99xf32, #tpu.memory_space<smem>>
    %372 = vector.broadcast %371 : f32 to vector<2x256xf32>
    %373 = arith.mulf %372, %49 : vector<2x256xf32>
    %c89 = arith.constant 89 : index
    %374 = memref.load %arg1[%c89] : memref<99xf32, #tpu.memory_space<smem>>
    %375 = vector.broadcast %374 : f32 to vector<2x256xf32>
    %376 = arith.mulf %375, %50 : vector<2x256xf32>
    %377 = arith.addf %373, %376 : vector<2x256xf32>
    %378 = arith.addf %322, %377 : vector<2x256xf32>
    %c41 = arith.constant 41 : index
    %379 = memref.load %arg1[%c41] : memref<99xf32, #tpu.memory_space<smem>>
    %380 = vector.broadcast %379 : f32 to vector<2x256xf32>
    %381 = arith.mulf %380, %49 : vector<2x256xf32>
    %c90 = arith.constant 90 : index
    %382 = memref.load %arg1[%c90] : memref<99xf32, #tpu.memory_space<smem>>
    %383 = vector.broadcast %382 : f32 to vector<2x256xf32>
    %384 = arith.mulf %383, %50 : vector<2x256xf32>
    %385 = arith.addf %381, %384 : vector<2x256xf32>
    %386 = arith.addf %330, %385 : vector<2x256xf32>
    %c42 = arith.constant 42 : index
    %387 = memref.load %arg1[%c42] : memref<99xf32, #tpu.memory_space<smem>>
    %388 = vector.broadcast %387 : f32 to vector<2x256xf32>
    %389 = arith.mulf %388, %56 : vector<2x256xf32>
    %c91 = arith.constant 91 : index
    %390 = memref.load %arg1[%c91] : memref<99xf32, #tpu.memory_space<smem>>
    %391 = vector.broadcast %390 : f32 to vector<2x256xf32>
    %392 = arith.mulf %391, %57 : vector<2x256xf32>
    %393 = arith.addf %389, %392 : vector<2x256xf32>
    %394 = arith.addf %338, %393 : vector<2x256xf32>
    %c43 = arith.constant 43 : index
    %395 = memref.load %arg1[%c43] : memref<99xf32, #tpu.memory_space<smem>>
    %396 = vector.broadcast %395 : f32 to vector<2x256xf32>
    %397 = arith.mulf %396, %56 : vector<2x256xf32>
    %c92 = arith.constant 92 : index
    %398 = memref.load %arg1[%c92] : memref<99xf32, #tpu.memory_space<smem>>
    %399 = vector.broadcast %398 : f32 to vector<2x256xf32>
    %400 = arith.mulf %399, %57 : vector<2x256xf32>
    %401 = arith.addf %397, %400 : vector<2x256xf32>
    %402 = arith.addf %346, %401 : vector<2x256xf32>
    %c44 = arith.constant 44 : index
    %403 = memref.load %arg1[%c44] : memref<99xf32, #tpu.memory_space<smem>>
    %404 = vector.broadcast %403 : f32 to vector<2x256xf32>
    %405 = arith.mulf %404, %56 : vector<2x256xf32>
    %c93 = arith.constant 93 : index
    %406 = memref.load %arg1[%c93] : memref<99xf32, #tpu.memory_space<smem>>
    %407 = vector.broadcast %406 : f32 to vector<2x256xf32>
    %408 = arith.mulf %407, %57 : vector<2x256xf32>
    %409 = arith.addf %405, %408 : vector<2x256xf32>
    %410 = arith.addf %354, %409 : vector<2x256xf32>
    %c45 = arith.constant 45 : index
    %411 = memref.load %arg1[%c45] : memref<99xf32, #tpu.memory_space<smem>>
    %412 = vector.broadcast %411 : f32 to vector<2x256xf32>
    %413 = arith.mulf %412, %56 : vector<2x256xf32>
    %c94 = arith.constant 94 : index
    %414 = memref.load %arg1[%c94] : memref<99xf32, #tpu.memory_space<smem>>
    %415 = vector.broadcast %414 : f32 to vector<2x256xf32>
    %416 = arith.mulf %415, %57 : vector<2x256xf32>
    %417 = arith.addf %413, %416 : vector<2x256xf32>
    %418 = arith.addf %362, %417 : vector<2x256xf32>
    %c46 = arith.constant 46 : index
    %419 = memref.load %arg1[%c46] : memref<99xf32, #tpu.memory_space<smem>>
    %420 = vector.broadcast %419 : f32 to vector<2x256xf32>
    %421 = arith.mulf %420, %56 : vector<2x256xf32>
    %c95 = arith.constant 95 : index
    %422 = memref.load %arg1[%c95] : memref<99xf32, #tpu.memory_space<smem>>
    %423 = vector.broadcast %422 : f32 to vector<2x256xf32>
    %424 = arith.mulf %423, %57 : vector<2x256xf32>
    %425 = arith.addf %421, %424 : vector<2x256xf32>
    %426 = arith.addf %370, %425 : vector<2x256xf32>
    %c47 = arith.constant 47 : index
    %427 = memref.load %arg1[%c47] : memref<99xf32, #tpu.memory_space<smem>>
    %428 = vector.broadcast %427 : f32 to vector<2x256xf32>
    %429 = arith.mulf %428, %56 : vector<2x256xf32>
    %c96 = arith.constant 96 : index
    %430 = memref.load %arg1[%c96] : memref<99xf32, #tpu.memory_space<smem>>
    %431 = vector.broadcast %430 : f32 to vector<2x256xf32>
    %432 = arith.mulf %431, %57 : vector<2x256xf32>
    %433 = arith.addf %429, %432 : vector<2x256xf32>
    %434 = arith.addf %378, %433 : vector<2x256xf32>
    %c48 = arith.constant 48 : index
    %435 = memref.load %arg1[%c48] : memref<99xf32, #tpu.memory_space<smem>>
    %436 = vector.broadcast %435 : f32 to vector<2x256xf32>
    %437 = arith.mulf %436, %56 : vector<2x256xf32>
    %c97 = arith.constant 97 : index
    %438 = memref.load %arg1[%c97] : memref<99xf32, #tpu.memory_space<smem>>
    %439 = vector.broadcast %438 : f32 to vector<2x256xf32>
    %440 = arith.mulf %439, %57 : vector<2x256xf32>
    %441 = arith.addf %437, %440 : vector<2x256xf32>
    %442 = arith.addf %386, %441 : vector<2x256xf32>
    %c3_i32 = arith.constant 3 : i32
    %443 = tpu.dynamic_rotate %394 by %c3_i32 dim 1 : vector<2x256xf32>, i32 -> vector<2x256xf32>
    %c7_30 = arith.constant 7 : index
    %c0_31 = arith.constant 0 : index
    %444 = vector.load %arg2[%c7_30, %c0_31] : memref<14x256xf32, #tpu.memory_space<vmem>>, vector<1x256xf32>
    %445 = vector.broadcast %444 : vector<1x256xf32> to vector<2x256xf32>
    %446 = arith.mulf %443, %445 : vector<2x256xf32>
    %c2_i32 = arith.constant 2 : i32
    %447 = tpu.dynamic_rotate %402 by %c2_i32 dim 1 : vector<2x256xf32>, i32 -> vector<2x256xf32>
    %c8_32 = arith.constant 8 : index
    %c0_33 = arith.constant 0 : index
    %448 = vector.load %arg2[%c8_32, %c0_33] : memref<14x256xf32, #tpu.memory_space<vmem>>, vector<1x256xf32>
    %449 = vector.broadcast %448 : vector<1x256xf32> to vector<2x256xf32>
    %450 = arith.mulf %447, %449 : vector<2x256xf32>
    %c1_i32 = arith.constant 1 : i32
    %451 = tpu.dynamic_rotate %410 by %c1_i32 dim 1 : vector<2x256xf32>, i32 -> vector<2x256xf32>
    %c9_34 = arith.constant 9 : index
    %c0_35 = arith.constant 0 : index
    %452 = vector.load %arg2[%c9_34, %c0_35] : memref<14x256xf32, #tpu.memory_space<vmem>>, vector<1x256xf32>
    %453 = vector.broadcast %452 : vector<1x256xf32> to vector<2x256xf32>
    %454 = arith.mulf %451, %453 : vector<2x256xf32>
    %c255_i32 = arith.constant 255 : i32
    %455 = tpu.dynamic_rotate %426 by %c255_i32 dim 1 : vector<2x256xf32>, i32 -> vector<2x256xf32>
    %c11_36 = arith.constant 11 : index
    %c0_37 = arith.constant 0 : index
    %456 = vector.load %arg2[%c11_36, %c0_37] : memref<14x256xf32, #tpu.memory_space<vmem>>, vector<1x256xf32>
    %457 = vector.broadcast %456 : vector<1x256xf32> to vector<2x256xf32>
    %458 = arith.mulf %455, %457 : vector<2x256xf32>
    %c254_i32 = arith.constant 254 : i32
    %459 = tpu.dynamic_rotate %434 by %c254_i32 dim 1 : vector<2x256xf32>, i32 -> vector<2x256xf32>
    %c12_38 = arith.constant 12 : index
    %c0_39 = arith.constant 0 : index
    %460 = vector.load %arg2[%c12_38, %c0_39] : memref<14x256xf32, #tpu.memory_space<vmem>>, vector<1x256xf32>
    %461 = vector.broadcast %460 : vector<1x256xf32> to vector<2x256xf32>
    %462 = arith.mulf %459, %461 : vector<2x256xf32>
    %c253_i32 = arith.constant 253 : i32
    %463 = tpu.dynamic_rotate %442 by %c253_i32 dim 1 : vector<2x256xf32>, i32 -> vector<2x256xf32>
    %c13_40 = arith.constant 13 : index
    %c0_41 = arith.constant 0 : index
    %464 = vector.load %arg2[%c13_40, %c0_41] : memref<14x256xf32, #tpu.memory_space<vmem>>, vector<1x256xf32>
    %465 = vector.broadcast %464 : vector<1x256xf32> to vector<2x256xf32>
    %466 = arith.mulf %463, %465 : vector<2x256xf32>
    %467 = arith.addf %446, %450 : vector<2x256xf32>
    %468 = arith.addf %454, %418 : vector<2x256xf32>
    %469 = arith.addf %458, %462 : vector<2x256xf32>
    %470 = arith.addf %467, %468 : vector<2x256xf32>
    %471 = arith.addf %469, %466 : vector<2x256xf32>
    %472 = arith.addf %470, %471 : vector<2x256xf32>
    %c98 = arith.constant 98 : index
    %473 = memref.load %arg1[%c98] : memref<99xf32, #tpu.memory_space<smem>>
    %474 = vector.broadcast %473 : f32 to vector<2x256xf32>
    %475 = arith.addf %472, %474 : vector<2x256xf32>
    %476 = arith.negf %475 : vector<2x256xf32>
    %477 = math.exp %476 : vector<2x256xf32>
    %cst_42 = arith.constant 1.000000e+00 : f32
    %478 = vector.broadcast %cst_42 : f32 to vector<2x256xf32>
    %479 = arith.addf %478, %477 : vector<2x256xf32>
    %480 = arith.divf %478, %479 : vector<2x256xf32>
    %c0_43 = arith.constant 0 : index
    %c0_44 = arith.constant 0 : index
    %481 = vector.load %arg4[%c0_43, %c0_44] : memref<2x256xf32, #tpu.memory_space<vmem>>, vector<2x256xf32>
    tpu.vector_store %arg4[%c0_43, %c0_44], %480 {strides = array<i32>} : memref<2x256xf32, #tpu.memory_space<vmem>>, vector<2x256xf32>,
    return
  }
  func.func @transform_0(%arg0: i32) -> i32 {
    %c0_i32 = arith.constant 0 : i32
    %c0_i32_0 = arith.constant 0 : i32
    return %c0_i32 : i32
  }
  func.func @transform_1(%arg0: i32) -> (i32, i32) {
    %c0_i32 = arith.constant 0 : i32
    %c0_i32_0 = arith.constant 0 : i32
    %c0_i32_1 = arith.constant 0 : i32
    return %c0_i32, %c0_i32_0 : i32, i32
  }
  func.func @transform_2(%arg0: i32) -> (i32, i32, i32) {
    %c0_i32 = arith.constant 0 : i32
    %c0_i32_0 = arith.constant 0 : i32
    %c0_i32_1 = arith.constant 0 : i32
    return %arg0, %c0_i32, %c0_i32_0 : i32, i32, i32
  }
  func.func @transform_3(%arg0: i32) -> (i32, i32) {
    %c0_i32 = arith.constant 0 : i32
    %c0_i32_0 = arith.constant 0 : i32
    return %arg0, %c0_i32 : i32, i32
  }
}

</mosaic_0001>

<llo_original>
// kernel: tpu_custom_call.1
$region0: #{tpu_custom_call.1}
  #allocation0 [shape = 'u32[]', space=smem, size = 0x4, offset = 0x4, fixed_abs, tag = 'smem constant byte address 0x4 - core index']
  #allocation1 [shape = 'u32[144,128]{1,0:T(1,128)}', space=vmem, size = 0x12000, scoped, tag = 'internal scratch']
  %s0 = inlined_call_operand.hbm [shape: f32[8,128], index: 0, kind: input, shape index: {}]
  %s1 = inlined_call_operand.hbm [shape: f32[8,128], index: 1, kind: output, shape index: {}]
  %s2 = sld [smem:[#allocation0]]
  $region18: #{tpu_custom_call.1} parent=0
    _
  %s4 = ssub.s32 1, %s2
  %s5 = scalar_select 0, %s4, %s2
  $region1: #{tpu_custom_call.1} parent=0
    #allocation2 [shape = 'u8[4096]{0}', space=vmem, size = 0x1000, scoped, tag = 'input window, operand 0, single buffered']
    #allocation3 [shape = 's32[1]{0}', space=sflag, size = 0x4, scoped, tag = 'scoped memory for tpu_custom_call.1']
    #allocation4 [shape = 's32[1]{0}', space=sflag, size = 0x4, scoped, tag = 'scoped memory for tpu_custom_call.1']
    #allocation5 [shape = 'u8[4096]{0}', space=vmem, size = 0x1000, scoped, tag = 'output window, operand 0, single buffered']
    %6 = vsyncpa [#allocation3], 0
    %7 = vsyncpa [#allocation4], 0
    // Predicated region
    $region2: #{tpu_custom_call.1} parent=1 // pred_check
      _
    $region3: #{tpu_custom_call.1} parent=1 // pred_check_branch
      %9 = sbr.rel (0) target = $region5
    $region4: #{tpu_custom_call.1} parent=1 // pred_region
      %s11 = ssub.s32 128, 128
      %12 = vsyncadd [#allocation3], %s11
      %s14 = sshll.u32 [#allocation2], 4
      %s15 = int_to_ptr.vmem [resolvable:$true] %s14
      %17 = dma.hbm_to_vmem [thread:$0]  %s0, 128, %s15, [#allocation3]
    $region5: #{tpu_custom_call.1} parent=1 // pred_fallthru
      _
    // Predicated region
    $region6: #{tpu_custom_call.1} parent=1 // pred_check
      _
    $region7: #{tpu_custom_call.1} parent=1 // pred_check_branch
      %19 = sbr.rel (0) target = $region9
    $region8: #{tpu_custom_call.1} parent=1 // pred_region
      %20 = dma.done [#allocation3], 128
    $region9: #{tpu_custom_call.1} parent=1 // pred_fallthru
      _
    %v21 = vld [vmem:[#allocation2] sm:$0xff]
    %22 = vrot.lane.b32.xlu0 %v21, 1
    %v23 = vpop.permute.xlu0 %22
    %24 = vst [vmem:[#allocation5] sm:$0xff] %v23
    // Predicated region
    $region10: #{tpu_custom_call.1} parent=1 // pred_check
      _
    $region11: #{tpu_custom_call.1} parent=1 // pred_check_branch
      %26 = sbr.rel (0) target = $region13
    $region12: #{tpu_custom_call.1} parent=1 // pred_region
      %s28 = ssub.s32 128, 128
      %29 = vsyncadd [#allocation4], %s28
      %s31 = sshll.u32 [#allocation5], 4
      %s32 = int_to_ptr.vmem [resolvable:$true] %s31
      %34 = dma.vmem_to_hbm [thread:$0]  %s32, 128, %s1, [#allocation4]
    $region13: #{tpu_custom_call.1} parent=1 // pred_fallthru
      _
    // Predicated region
    $region14: #{tpu_custom_call.1} parent=1 // pred_check
      _
    $region15: #{tpu_custom_call.1} parent=1 // pred_check_branch
      %36 = sbr.rel (0) target = $region17
    $region16: #{tpu_custom_call.1} parent=1 // pred_region
      %37 = dma.done [#allocation4], 128
    $region17: #{tpu_custom_call.1} parent=1 // pred_fallthru
      _
    %38 = vsyncpa [#allocation3], 1
    %39 = vsyncpa [#allocation4], 1

// kernel: tpu_custom_call.1
$region0: #{tpu_custom_call.1}
  #allocation0 [shape = 'u32[]', space=smem, size = 0x4, offset = 0x4, fixed_abs, tag = 'smem constant byte address 0x4 - core index']
  #allocation1 [shape = 'u32[144,128]{1,0:T(1,128)}', space=vmem, size = 0x12000, scoped, tag = 'internal scratch']
  %s0 = inlined_call_operand.hbm [shape: f32[99], index: 0, kind: input, shape index: {}]
  %s1 = inlined_call_operand.hbm [shape: f32[14,256], index: 1, kind: input, shape index: {}]
  %s2 = inlined_call_operand.hbm [shape: f32[2,4,256], index: 2, kind: input, shape index: {}]
  %s3 = inlined_call_operand.hbm [shape: f32[2,256], index: 3, kind: output, shape index: {}]
  %s4 = sld [smem:[#allocation0]]
  $region34: #{tpu_custom_call.1} parent=0
    _
  %s6 = ssub.s32 1, %s4
  %s7 = scalar_select 0, %s6, %s4
  $region1: #{tpu_custom_call.1} parent=0
    #allocation2 [shape = 'u8[512]{0}', space=smem, size = 0x200, scoped, tag = 'input window, operand 0, single buffered']
    #allocation3 [shape = 's32[1]{0}', space=sflag, size = 0x4, scoped, tag = 'scoped memory for tpu_custom_call.1']
    #allocation4 [shape = 's32[1]{0}', space=sflag, size = 0x4, scoped, tag = 'scoped memory for tpu_custom_call.1']
    #allocation5 [shape = 's32[1]{0}', space=sflag, size = 0x4, scoped, tag = 'scoped memory for tpu_custom_call.1']
    #allocation6 [shape = 'u8[16384]{0}', space=vmem, size = 0x4000, scoped, tag = 'input window, operand 1, single buffered']
    #allocation7 [shape = 'u8[8192]{0}', space=vmem, size = 0x2000, scoped, tag = 'input window, operand 2, single buffered']
    #allocation8 [shape = 's32[1]{0}', space=sflag, size = 0x4, scoped, tag = 'scoped memory for tpu_custom_call.1']
    #allocation9 [shape = 'u8[2048]{0}', space=vmem, size = 0x800, scoped, tag = 'output window, operand 0, single buffered']
    %8 = vsyncpa [#allocation5], 0
    %9 = vsyncpa [#allocation3], 0
    %10 = vsyncpa [#allocation8], 0
    %11 = vsyncpa [#allocation4], 0
    // Predicated region
    $region2: #{tpu_custom_call.1} parent=1 // pred_check
      _
    $region3: #{tpu_custom_call.1} parent=1 // pred_check_branch
      %13 = sbr.rel (0) target = $region5
    $region4: #{tpu_custom_call.1} parent=1 // pred_region
      %s15 = ssub.s32 16, 16
      %16 = vsyncadd [#allocation5], %s15
      %19 = dma.hbm_to_smem %s0, 16, [#allocation2], [#allocation5]
    $region5: #{tpu_custom_call.1} parent=1 // pred_fallthru
      _
    // Predicated region
    $region6: #{tpu_custom_call.1} parent=1 // pred_check
      _
    $region7: #{tpu_custom_call.1} parent=1 // pred_check_branch
      %21 = sbr.rel (0) target = $region9
    $region8: #{tpu_custom_call.1} parent=1 // pred_region
      %s23 = ssub.s32 512, 512
      %24 = vsyncadd [#allocation3], %s23
      %s25 = sshll.u32 [#allocation6], 4
      %s26 = int_to_ptr.vmem [resolvable:$true] %s25
      %31 = dma.hbm_to_vmem [thread:$0]  %s1, 512, %s26, [#allocation3], 256, 256, 16
    $region9: #{tpu_custom_call.1} parent=1 // pred_fallthru
      _
    // Predicated region
    $region10: #{tpu_custom_call.1} parent=1 // pred_check
      _
    $region11: #{tpu_custom_call.1} parent=1 // pred_check_branch
      %33 = sbr.rel (0) target = $region13
    $region12: #{tpu_custom_call.1} parent=1 // pred_region
      %s35 = ssub.s32 256, 256
      %36 = vsyncadd [#allocation8], %s35
      %s37 = sshll.u32 [#allocation7], 4
      %s38 = int_to_ptr.vmem [resolvable:$true] %s37
      %43 = dma.hbm_to_vmem [thread:$0]  %s2, 256, %s38, [#allocation8], 128, 128, 8
    $region13: #{tpu_custom_call.1} parent=1 // pred_fallthru
      _
    // Predicated region
    $region14: #{tpu_custom_call.1} parent=1 // pred_check
      _
    $region15: #{tpu_custom_call.1} parent=1 // pred_check_branch
      %45 = sbr.rel (0) target = $region17
    $region16: #{tpu_custom_call.1} parent=1 // pred_region
      %46 = dma.done [#allocation5], 16
    $region17: #{tpu_custom_call.1} parent=1 // pred_fallthru
      _
    // Predicated region
    $region18: #{tpu_custom_call.1} parent=1 // pred_check
      _
    $region19: #{tpu_custom_call.1} parent=1 // pred_check_branch
      %48 = sbr.rel (0) target = $region21
    $region20: #{tpu_custom_call.1} parent=1 // pred_region
      %49 = dma.done [#allocation3], 512
    $region21: #{tpu_custom_call.1} parent=1 // pred_fallthru
      _
    // Predicated region
    $region22: #{tpu_custom_call.1} parent=1 // pred_check
      _
    $region23: #{tpu_custom_call.1} parent=1 // pred_check_branch
      %51 = sbr.rel (0) target = $region25
    $region24: #{tpu_custom_call.1} parent=1 // pred_region
      %52 = dma.done [#allocation8], 256
    $region25: #{tpu_custom_call.1} parent=1 // pred_fallthru
      _
    %53 = sfence
    %v54 = vld [vmem:[#allocation7] ss:$4 sm:$0x3]
    %s55 = scalar_lea.vmem [#allocation7], 8
    %v56 = vld [vmem:[%s55] ss:$4 sm:$0x3]
    %s57 = scalar_lea.vmem [#allocation7], 1
    %v58 = vld [vmem:[%s57] ss:$4 sm:$0x3]
    %s59 = scalar_lea.vmem [#allocation7], 9
    %v60 = vld [vmem:[%s59] ss:$4 sm:$0x3]
    %s61 = scalar_lea.vmem [#allocation7], 2
    %v62 = vld [vmem:[%s61] ss:$4 sm:$0x3]
    %s63 = scalar_lea.vmem [#allocation7], 10
    %v64 = vld [vmem:[%s63] ss:$4 sm:$0x3]
    %v65 = vadd.f32 %v54, %v62
    %v66 = vadd.f32 %v56, %v64
    %v67 = vmax.f32 %v54, %v62
    %v68 = vmax.f32 %v56, %v64
    %s69 = scalar_lea.vmem [#allocation7], 3
    %v70 = vld [vmem:[%s69] ss:$4 sm:$0x3]
    %s71 = scalar_lea.vmem [#allocation7], 11
    %v72 = vld [vmem:[%s71] ss:$4 sm:$0x3]
    %v73 = vadd.f32 %v58, %v70
    %v74 = vadd.f32 %v60, %v72
    %v75 = vmax.f32 %v58, %v70
    %v76 = vmax.f32 %v60, %v72
    %v77 = vadd.f32 %v65, %v73
    %v78 = vadd.f32 %v66, %v74
    %v79 = vmax.f32 %v67, %v75
    %v80 = vmax.f32 %v68, %v76
    %v81 = vmul.f32 %v77, 0.25
    %v82 = vmul.f32 %v78, 0.25
    %v85 = vcombine.low %v81, %v82
    %v87 = vunpack.c.l.s4 1966171168
    %v88 = vunpack.c.0.s8 %v87
    %v89 = vlaneseq
    %v90 = vshrl.u32 %v89, 7
    %v91 = vsub.s32 %v88, %v90
    %v92 = vrot.slane %v85, %v91
    %v93 = vcombine.high %v92, %v92
    %v95 = vunpack.c.l.s4 1966171168
    %v96 = vunpack.c.0.s8 %v95
    %v97 = vlaneseq
    %v98 = vshrl.u32 %v97, 7
    %v99 = vsub.s32 %v96, %v98
    %v100 = vrot.slane %v92, %v99
    %v102 = vunpack.c.l.s4 1966171168
    %v103 = vunpack.c.0.s8 %v102
    %v104 = vlaneseq
    %v105 = vshrl.u32 %v104, 7
    %v106 = vsub.s32 %v103, %v105
    %v107 = vrot.slane %v93, %v106
    %110 = vrot.lane.b32.xlu0 %v100, 48
    %v111 = vpop.permute.xlu0 %110
    %112 = vrot.lane.b32.xlu0 %v107, 48
    %v113 = vpop.permute.xlu0 %112
    %v114 = vlaneseq
    %v115 = vand.u32 %v114, 127
    %vm116 = vcmp.lt.s32.totalorder %v115, 48
    %v117 = vsel %vm116, %v111, %v113
    %v118 = vsel %vm116, %v113, %v111
    %v121 = vcombine.low %v79, %v80
    %v123 = vunpack.c.l.s4 1966171168
    %v124 = vunpack.c.0.s8 %v123
    %v125 = vlaneseq
    %v126 = vshrl.u32 %v125, 7
    %v127 = vsub.s32 %v124, %v126
    %v128 = vrot.slane %v121, %v127
    %v129 = vcombine.high %v128, %v128
    %v131 = vunpack.c.l.s4 1966171168
    %v132 = vunpack.c.0.s8 %v131
    %v133 = vlaneseq
    %v134 = vshrl.u32 %v133, 7
    %v135 = vsub.s32 %v132, %v134
    %v136 = vrot.slane %v128, %v135
    %v138 = vunpack.c.l.s4 1966171168
    %v139 = vunpack.c.0.s8 %v138
    %v140 = vlaneseq
    %v141 = vshrl.u32 %v140, 7
    %v142 = vsub.s32 %v139, %v141
    %v143 = vrot.slane %v129, %v142
    %146 = vrot.lane.b32.xlu0 %v136, 48
    %v147 = vpop.permute.xlu0 %146
    %148 = vrot.lane.b32.xlu0 %v143, 48
    %v149 = vpop.permute.xlu0 %148
    %v150 = vsel %vm116, %v147, %v149
    %v151 = vsel %vm116, %v149, %v147
    %v152 = vld [vmem:[#allocation6] ss:$8 sm:$0x3]
    %v154 = vlaneseq
    %v155 = vshrl.u32 %v154, 7
    %v156 = vsub.s32 0, %v155
    %v157 = vrot.slane %v152, %v156
    %v158 = vlaneseq
    %v159 = vshrl.u32 %v158, 7
    %v160 = vsub.s32 1, %v159
    %v161 = vrot.slane %v152, %v160
    %v164 = vmul.f32 %v118, %v157
    %v165 = vmul.f32 %v117, %v161
    %v166 = vmul.f32 %v151, %v157
    %v167 = vmul.f32 %v150, %v161
    %168 = vrot.lane.b32.xlu0 %v100, 32
    %v169 = vpop.permute.xlu0 %168
    %170 = vrot.lane.b32.xlu0 %v107, 32
    %v171 = vpop.permute.xlu0 %170
    %vm172 = vcmp.lt.s32.totalorder %v115, 32
    %v173 = vsel %vm172, %v169, %v171
    %v174 = vsel %vm172, %v171, %v169
    %175 = vrot.lane.b32.xlu0 %v136, 32
    %v176 = vpop.permute.xlu0 %175
    %177 = vrot.lane.b32.xlu0 %v143, 32
    %v178 = vpop.permute.xlu0 %177
    %v179 = vsel %vm172, %v176, %v178
    %v180 = vsel %vm172, %v178, %v176
    %s181 = scalar_lea.vmem [#allocation6], 1
    %v182 = vld [vmem:[%s181] ss:$8 sm:$0x3]
    %v184 = vlaneseq
    %v185 = vshrl.u32 %v184, 7
    %v186 = vsub.s32 0, %v185
    %v187 = vrot.slane %v182, %v186
    %v188 = vlaneseq
    %v189 = vshrl.u32 %v188, 7
    %v190 = vsub.s32 1, %v189
    %v191 = vrot.slane %v182, %v190
    %v194 = vmul.f32 %v174, %v187
    %v195 = vmul.f32 %v173, %v191
    %v196 = vmul.f32 %v180, %v187
    %v197 = vmul.f32 %v179, %v191
    %198 = vrot.lane.b32.xlu0 %v100, 16
    %v199 = vpop.permute.xlu0 %198
    %200 = vrot.lane.b32.xlu0 %v107, 16
    %v201 = vpop.permute.xlu0 %200
    %vm202 = vcmp.lt.s32.totalorder %v115, 16
    %v203 = vsel %vm202, %v199, %v201
    %v204 = vsel %vm202, %v201, %v199
    %205 = vrot.lane.b32.xlu0 %v136, 16
    %v206 = vpop.permute.xlu0 %205
    %207 = vrot.lane.b32.xlu0 %v143, 16
    %v208 = vpop.permute.xlu0 %207
    %v209 = vsel %vm202, %v206, %v208
    %v210 = vsel %vm202, %v208, %v206
    %s211 = scalar_lea.vmem [#allocation6], 2
    %v212 = vld [vmem:[%s211] ss:$8 sm:$0x3]
    %v214 = vlaneseq
    %v215 = vshrl.u32 %v214, 7
    %v216 = vsub.s32 0, %v215
    %v217 = vrot.slane %v212, %v216
    %v218 = vlaneseq
    %v219 = vshrl.u32 %v218, 7
    %v220 = vsub.s32 1, %v219
    %v221 = vrot.slane %v212, %v220
    %v224 = vmul.f32 %v204, %v217
    %v225 = vmul.f32 %v203, %v221
    %v226 = vmul.f32 %v210, %v217
    %v227 = vmul.f32 %v209, %v221
    %228 = vrot.lane.b32.xlu0 %v100, 112
    %v229 = vpop.permute.xlu0 %228
    %230 = vrot.lane.b32.xlu0 %v107, 112
    %v231 = vpop.permute.xlu0 %230
    %vm232 = vcmp.lt.s32.totalorder %v115, 112
    %v233 = vsel %vm232, %v229, %v231
    %v234 = vsel %vm232, %v231, %v229
    %235 = vrot.lane.b32.xlu0 %v136, 112
    %v236 = vpop.permute.xlu0 %235
    %237 = vrot.lane.b32.xlu0 %v143, 112
    %v238 = vpop.permute.xlu0 %237
    %v239 = vsel %vm232, %v236, %v238
    %v240 = vsel %vm232, %v238, %v236
    %s241 = scalar_lea.vmem [#allocation6], 4
    %v242 = vld [vmem:[%s241] ss:$8 sm:$0x3]
    %v244 = vlaneseq
    %v245 = vshrl.u32 %v244, 7
    %v246 = vsub.s32 0, %v245
    %v247 = vrot.slane %v242, %v246
    %v248 = vlaneseq
    %v249 = vshrl.u32 %v248, 7
    %v250 = vsub.s32 1, %v249
    %v251 = vrot.slane %v242, %v250
    %v254 = vmul.f32 %v233, %v247
    %v255 = vmul.f32 %v234, %v251
    %v256 = vmul.f32 %v239, %v247
    %v257 = vmul.f32 %v240, %v251
    %258 = vrot.lane.b32.xlu0 %v100, 96
    %v259 = vpop.permute.xlu0 %258
    %260 = vrot.lane.b32.xlu0 %v107, 96
    %v261 = vpop.permute.xlu0 %260
    %vm262 = vcmp.lt.s32.totalorder %v115, 96
    %v263 = vsel %vm262, %v259, %v261
    %v264 = vsel %vm262, %v261, %v259
    %265 = vrot.lane.b32.xlu0 %v136, 96
    %v266 = vpop.permute.xlu0 %265
    %267 = vrot.lane.b32.xlu0 %v143, 96
    %v268 = vpop.permute.xlu0 %267
    %v269 = vsel %vm262, %v266, %v268
    %v270 = vsel %vm262, %v268, %v266
    %s271 = scalar_lea.vmem [#allocation6], 5
    %v272 = vld [vmem:[%s271] ss:$8 sm:$0x3]
    %v274 = vlaneseq
    %v275 = vshrl.u32 %v274, 7
    %v276 = vsub.s32 0, %v275
    %v277 = vrot.slane %v272, %v276
    %v278 = vlaneseq
    %v279 = vshrl.u32 %v278, 7
    %v280 = vsub.s32 1, %v279
    %v281 = vrot.slane %v272, %v280
    %v284 = vmul.f32 %v263, %v277
    %v285 = vmul.f32 %v264, %v281
    %v286 = vmul.f32 %v269, %v277
    %v287 = vmul.f32 %v270, %v281
    %288 = vrot.lane.b32.xlu0 %v100, 80
    %v289 = vpop.permute.xlu0 %288
    %290 = vrot.lane.b32.xlu0 %v107, 80
    %v291 = vpop.permute.xlu0 %290
    %vm292 = vcmp.lt.s32.totalorder %v115, 80
    %v293 = vsel %vm292, %v289, %v291
    %v294 = vsel %vm292, %v291, %v289
    %295 = vrot.lane.b32.xlu0 %v136, 80
    %v296 = vpop.permute.xlu0 %295
    %297 = vrot.lane.b32.xlu0 %v143, 80
    %v298 = vpop.permute.xlu0 %297
    %v299 = vsel %vm292, %v296, %v298
    %v300 = vsel %vm292, %v298, %v296
    %s301 = scalar_lea.vmem [#allocation6], 6
    %v302 = vld [vmem:[%s301] ss:$8 sm:$0x3]
    %v304 = vlaneseq
    %v305 = vshrl.u32 %v304, 7
    %v306 = vsub.s32 0, %v305
    %v307 = vrot.slane %v302, %v306
    %v308 = vlaneseq
    %v309 = vshrl.u32 %v308, 7
    %v310 = vsub.s32 1, %v309
    %v311 = vrot.slane %v302, %v310
    %v314 = vmul.f32 %v293, %v307
    %v315 = vmul.f32 %v294, %v311
    %v316 = vmul.f32 %v299, %v307
    %v317 = vmul.f32 %v300, %v311
    %s318 = sld [smem:[#allocation2]]
    %v319 = vstv %s318
    %v320 = vmul.f32 %v319, %v164
    %v321 = vmul.f32 %v319, %v165
    %s322 = sld [smem:[#allocation2 + $0x31]]
    %v323 = vstv %s322
    %v324 = vmul.f32 %v323, %v166
    %v325 = vmul.f32 %v323, %v167
    %v326 = vadd.f32 %v320, %v324
    %v327 = vadd.f32 %v321, %v325
    %s328 = sld [smem:[#allocation2 + $0x1]]
    %v329 = vstv %s328
    %v330 = vmul.f32 %v329, %v164
    %v331 = vmul.f32 %v329, %v165
    %s332 = sld [smem:[#allocation2 + $0x32]]
    %v333 = vstv %s332
    %v334 = vmul.f32 %v333, %v166
    %v335 = vmul.f32 %v333, %v167
    %v336 = vadd.f32 %v330, %v334
    %v337 = vadd.f32 %v331, %v335
    %s338 = sld [smem:[#allocation2 + $0x2]]
    %v339 = vstv %s338
    %v340 = vmul.f32 %v339, %v164
    %v341 = vmul.f32 %v339, %v165
    %s342 = sld [smem:[#allocation2 + $0x33]]
    %v343 = vstv %s342
    %v344 = vmul.f32 %v343, %v166
    %v345 = vmul.f32 %v343, %v167
    %v346 = vadd.f32 %v340, %v344
    %v347 = vadd.f32 %v341, %v345
    %s348 = sld [smem:[#allocation2 + $0x3]]
    %v349 = vstv %s348
    %v350 = vmul.f32 %v349, %v164
    %v351 = vmul.f32 %v349, %v165
    %s352 = sld [smem:[#allocation2 + $0x34]]
    %v353 = vstv %s352
    %v354 = vmul.f32 %v353, %v166
    %v355 = vmul.f32 %v353, %v167
    %v356 = vadd.f32 %v350, %v354
    %v357 = vadd.f32 %v351, %v355
    %s358 = sld [smem:[#allocation2 + $0x4]]
    %v359 = vstv %s358
    %v360 = vmul.f32 %v359, %v164
    %v361 = vmul.f32 %v359, %v165
    %s362 = sld [smem:[#allocation2 + $0x35]]
    %v363 = vstv %s362
    %v364 = vmul.f32 %v363, %v166
    %v365 = vmul.f32 %v363, %v167
    %v366 = vadd.f32 %v360, %v364
    %v367 = vadd.f32 %v361, %v365
    %s368 = sld [smem:[#allocation2 + $0x5]]
    %v369 = vstv %s368
    %v370 = vmul.f32 %v369, %v164
    %v371 = vmul.f32 %v369, %v165
    %s372 = sld [smem:[#allocation2 + $0x36]]
    %v373 = vstv %s372
    %v374 = vmul.f32 %v373, %v166
    %v375 = vmul.f32 %v373, %v167
    %v376 = vadd.f32 %v370, %v374
    %v377 = vadd.f32 %v371, %v375
    %s378 = sld [smem:[#allocation2 + $0x6]]
    %v379 = vstv %s378
    %v380 = vmul.f32 %v379, %v164
    %v381 = vmul.f32 %v379, %v165
    %s382 = sld [smem:[#allocation2 + $0x37]]
    %v383 = vstv %s382
    %v384 = vmul.f32 %v383, %v166
    %v385 = vmul.f32 %v383, %v167
    %v386 = vadd.f32 %v380, %v384
    %v387 = vadd.f32 %v381, %v385
    %s388 = sld [smem:[#allocation2 + $0x7]]
    %v389 = vstv %s388
    %v390 = vmul.f32 %v389, %v194
    %v391 = vmul.f32 %v389, %v195
    %s392 = sld [smem:[#allocation2 + $0x38]]
    %v393 = vstv %s392
    %v394 = vmul.f32 %v393, %v196
    %v395 = vmul.f32 %v393, %v197
    %v396 = vadd.f32 %v390, %v394
    %v397 = vadd.f32 %v391, %v395
    %v398 = vadd.f32 %v326, %v396
    %v399 = vadd.f32 %v327, %v397
    %s400 = sld [smem:[#allocation2 + $0x8]]
    %v401 = vstv %s400
    %v402 = vmul.f32 %v401, %v194
    %v403 = vmul.f32 %v401, %v195
    %s404 = sld [smem:[#allocation2 + $0x39]]
    %v405 = vstv %s404
    %v406 = vmul.f32 %v405, %v196
    %v407 = vmul.f32 %v405, %v197
    %v408 = vadd.f32 %v402, %v406
    %v409 = vadd.f32 %v403, %v407
    %v410 = vadd.f32 %v336, %v408
    %v411 = vadd.f32 %v337, %v409
    %s412 = sld [smem:[#allocation2 + $0x9]]
    %v413 = vstv %s412
    %v414 = vmul.f32 %v413, %v194
    %v415 = vmul.f32 %v413, %v195
    %s416 = sld [smem:[#allocation2 + $0x3a]]
    %v417 = vstv %s416
    %v418 = vmul.f32 %v417, %v196
    %v419 = vmul.f32 %v417, %v197
    %v420 = vadd.f32 %v414, %v418
    %v421 = vadd.f32 %v415, %v419
    %v422 = vadd.f32 %v346, %v420
    %v423 = vadd.f32 %v347, %v421
    %s424 = sld [smem:[#allocation2 + $0xa]]
    %v425 = vstv %s424
    %v426 = vmul.f32 %v425, %v194
    %v427 = vmul.f32 %v425, %v195
    %s428 = sld [smem:[#allocation2 + $0x3b]]
    %v429 = vstv %s428
    %v430 = vmul.f32 %v429, %v196
    %v431 = vmul.f32 %v429, %v197
    %v432 = vadd.f32 %v426, %v430
    %v433 = vadd.f32 %v427, %v431
    %v434 = vadd.f32 %v356, %v432
    %v435 = vadd.f32 %v357, %v433
    %s436 = sld [smem:[#allocation2 + $0xb]]
    %v437 = vstv %s436
    %v438 = vmul.f32 %v437, %v194
    %v439 = vmul.f32 %v437, %v195
    %s440 = sld [smem:[#allocation2 + $0x3c]]
    %v441 = vstv %s440
    %v442 = vmul.f32 %v441, %v196
    %v443 = vmul.f32 %v441, %v197
    %v444 = vadd.f32 %v438, %v442
    %v445 = vadd.f32 %v439, %v443
    %v446 = vadd.f32 %v366, %v444
    %v447 = vadd.f32 %v367, %v445
    %s448 = sld [smem:[#allocation2 + $0xc]]
    %v449 = vstv %s448
    %v450 = vmul.f32 %v449, %v194
    %v451 = vmul.f32 %v449, %v195
    %s452 = sld [smem:[#allocation2 + $0x3d]]
    %v453 = vstv %s452
    %v454 = vmul.f32 %v453, %v196
    %v455 = vmul.f32 %v453, %v197
    %v456 = vadd.f32 %v450, %v454
    %v457 = vadd.f32 %v451, %v455
    %v458 = vadd.f32 %v376, %v456
    %v459 = vadd.f32 %v377, %v457
    %s460 = sld [smem:[#allocation2 + $0xd]]
    %v461 = vstv %s460
    %v462 = vmul.f32 %v461, %v194
    %v463 = vmul.f32 %v461, %v195
    %s464 = sld [smem:[#allocation2 + $0x3e]]
    %v465 = vstv %s464
    %v466 = vmul.f32 %v465, %v196
    %v467 = vmul.f32 %v465, %v197
    %v468 = vadd.f32 %v462, %v466
    %v469 = vadd.f32 %v463, %v467
    %v470 = vadd.f32 %v386, %v468
    %v471 = vadd.f32 %v387, %v469
    %s472 = sld [smem:[#allocation2 + $0xe]]
    %v473 = vstv %s472
    %v474 = vmul.f32 %v473, %v224
    %v475 = vmul.f32 %v473, %v225
    %s476 = sld [smem:[#allocation2 + $0x3f]]
    %v477 = vstv %s476
    %v478 = vmul.f32 %v477, %v226
    %v479 = vmul.f32 %v477, %v227
    %v480 = vadd.f32 %v474, %v478
    %v481 = vadd.f32 %v475, %v479
    %v482 = vadd.f32 %v398, %v480
    %v483 = vadd.f32 %v399, %v481
    %s484 = sld [smem:[#allocation2 + $0xf]]
    %v485 = vstv %s484
    %v486 = vmul.f32 %v485, %v224
    %v487 = vmul.f32 %v485, %v225
    %s488 = sld [smem:[#allocation2 + $0x40]]
    %v489 = vstv %s488
    %v490 = vmul.f32 %v489, %v226
    %v491 = vmul.f32 %v489, %v227
    %v492 = vadd.f32 %v486, %v490
    %v493 = vadd.f32 %v487, %v491
    %v494 = vadd.f32 %v410, %v492
    %v495 = vadd.f32 %v411, %v493
    %s496 = sld [smem:[#allocation2 + $0x10]]
    %v497 = vstv %s496
    %v498 = vmul.f32 %v497, %v224
    %v499 = vmul.f32 %v497, %v225
    %s500 = sld [smem:[#allocation2 + $0x41]]
    %v501 = vstv %s500
    %v502 = vmul.f32 %v501, %v226
    %v503 = vmul.f32 %v501, %v227
    %v504 = vadd.f32 %v498, %v502
    %v505 = vadd.f32 %v499, %v503
    %v506 = vadd.f32 %v422, %v504
    %v507 = vadd.f32 %v423, %v505
    %s508 = sld [smem:[#allocation2 + $0x11]]
    %v509 = vstv %s508
    %v510 = vmul.f32 %v509, %v224
    %v511 = vmul.f32 %v509, %v225
    %s512 = sld [smem:[#allocation2 + $0x42]]
    %v513 = vstv %s512
    %v514 = vmul.f32 %v513, %v226
    %v515 = vmul.f32 %v513, %v227
    %v516 = vadd.f32 %v510, %v514
    %v517 = vadd.f32 %v511, %v515
    %v518 = vadd.f32 %v434, %v516
    %v519 = vadd.f32 %v435, %v517
    %s520 = sld [smem:[#allocation2 + $0x12]]
    %v521 = vstv %s520
    %v522 = vmul.f32 %v521, %v224
    %v523 = vmul.f32 %v521, %v225
    %s524 = sld [smem:[#allocation2 + $0x43]]
    %v525 = vstv %s524
    %v526 = vmul.f32 %v525, %v226
    %v527 = vmul.f32 %v525, %v227
    %v528 = vadd.f32 %v522, %v526
    %v529 = vadd.f32 %v523, %v527
    %v530 = vadd.f32 %v446, %v528
    %v531 = vadd.f32 %v447, %v529
    %s532 = sld [smem:[#allocation2 + $0x13]]
    %v533 = vstv %s532
    %v534 = vmul.f32 %v533, %v224
    %v535 = vmul.f32 %v533, %v225
    %s536 = sld [smem:[#allocation2 + $0x44]]
    %v537 = vstv %s536
    %v538 = vmul.f32 %v537, %v226
    %v539 = vmul.f32 %v537, %v227
    %v540 = vadd.f32 %v534, %v538
    %v541 = vadd.f32 %v535, %v539
    %v542 = vadd.f32 %v458, %v540
    %v543 = vadd.f32 %v459, %v541
    %s544 = sld [smem:[#allocation2 + $0x14]]
    %v545 = vstv %s544
    %v546 = vmul.f32 %v545, %v224
    %v547 = vmul.f32 %v545, %v225
    %s548 = sld [smem:[#allocation2 + $0x45]]
    %v549 = vstv %s548
    %v550 = vmul.f32 %v549, %v226
    %v551 = vmul.f32 %v549, %v227
    %v552 = vadd.f32 %v546, %v550
    %v553 = vadd.f32 %v547, %v551
    %v554 = vadd.f32 %v470, %v552
    %v555 = vadd.f32 %v471, %v553
    %s556 = sld [smem:[#allocation2 + $0x15]]
    %v557 = vstv %s556
    %v558 = vmul.f32 %v557, %v81
    %v559 = vmul.f32 %v557, %v82
    %s560 = sld [smem:[#allocation2 + $0x46]]
    %v561 = vstv %s560
    %v562 = vmul.f32 %v561, %v79
    %v563 = vmul.f32 %v561, %v80
    %v564 = vadd.f32 %v558, %v562
    %v565 = vadd.f32 %v559, %v563
    %v568 = vcombine.low %v564, %v565
    %v570 = vunpack.c.l.s4 1966171168
    %v571 = vunpack.c.0.s8 %v570
    %v572 = vlaneseq
    %v573 = vshrl.u32 %v572, 7
    %v574 = vsub.s32 %v571, %v573
    %v575 = vrot.slane %v568, %v574
    %v576 = vcombine.high %v575, %v575
    %v578 = vunpack.c.l.s4 1966171168
    %v579 = vunpack.c.0.s8 %v578
    %v580 = vlaneseq
    %v581 = vshrl.u32 %v580, 7
    %v582 = vsub.s32 %v579, %v581
    %v583 = vrot.slane %v575, %v582
    %v585 = vunpack.c.l.s4 1966171168
    %v586 = vunpack.c.0.s8 %v585
    %v587 = vlaneseq
    %v588 = vshrl.u32 %v587, 7
    %v589 = vsub.s32 %v586, %v588
    %v590 = vrot.slane %v576, %v589
    %v593 = vadd.f32 %v482, %v583
    %v594 = vadd.f32 %v483, %v590
    %s595 = sld [smem:[#allocation2 + $0x16]]
    %v596 = vstv %s595
    %v597 = vmul.f32 %v596, %v81
    %v598 = vmul.f32 %v596, %v82
    %s599 = sld [smem:[#allocation2 + $0x47]]
    %v600 = vstv %s599
    %v601 = vmul.f32 %v600, %v79
    %v602 = vmul.f32 %v600, %v80
    %v603 = vadd.f32 %v597, %v601
    %v604 = vadd.f32 %v598, %v602
    %v607 = vcombine.low %v603, %v604
    %v609 = vunpack.c.l.s4 1966171168
    %v610 = vunpack.c.0.s8 %v609
    %v611 = vlaneseq
    %v612 = vshrl.u32 %v611, 7
    %v613 = vsub.s32 %v610, %v612
    %v614 = vrot.slane %v607, %v613
    %v615 = vcombine.high %v614, %v614
    %v617 = vunpack.c.l.s4 1966171168
    %v618 = vunpack.c.0.s8 %v617
    %v619 = vlaneseq
    %v620 = vshrl.u32 %v619, 7
    %v621 = vsub.s32 %v618, %v620
    %v622 = vrot.slane %v614, %v621
    %v624 = vunpack.c.l.s4 1966171168
    %v625 = vunpack.c.0.s8 %v624
    %v626 = vlaneseq
    %v627 = vshrl.u32 %v626, 7
    %v628 = vsub.s32 %v625, %v627
    %v629 = vrot.slane %v615, %v628
    %v632 = vadd.f32 %v494, %v622
    %v633 = vadd.f32 %v495, %v629
    %s634 = sld [smem:[#allocation2 + $0x17]]
    %v635 = vstv %s634
    %v636 = vmul.f32 %v635, %v81
    %v637 = vmul.f32 %v635, %v82
    %s638 = sld [smem:[#allocation2 + $0x48]]
    %v639 = vstv %s638
    %v640 = vmul.f32 %v639, %v79
    %v641 = vmul.f32 %v639, %v80
    %v642 = vadd.f32 %v636, %v640
    %v643 = vadd.f32 %v637, %v641
    %v646 = vcombine.low %v642, %v643
    %v648 = vunpack.c.l.s4 1966171168
    %v649 = vunpack.c.0.s8 %v648
    %v650 = vlaneseq
    %v651 = vshrl.u32 %v650, 7
    %v652 = vsub.s32 %v649, %v651
    %v653 = vrot.slane %v646, %v652
    %v654 = vcombine.high %v653, %v653
    %v656 = vunpack.c.l.s4 1966171168
    %v657 = vunpack.c.0.s8 %v656
    %v658 = vlaneseq
    %v659 = vshrl.u32 %v658, 7
    %v660 = vsub.s32 %v657, %v659
    %v661 = vrot.slane %v653, %v660
    %v663 = vunpack.c.l.s4 1966171168
    %v664 = vunpack.c.0.s8 %v663
    %v665 = vlaneseq
    %v666 = vshrl.u32 %v665, 7
    %v667 = vsub.s32 %v664, %v666
    %v668 = vrot.slane %v654, %v667
    %v671 = vadd.f32 %v506, %v661
    %v672 = vadd.f32 %v507, %v668
    %s673 = sld [smem:[#allocation2 + $0x18]]
    %v674 = vstv %s673
    %v675 = vmul.f32 %v674, %v81
    %v676 = vmul.f32 %v674, %v82
    %s677 = sld [smem:[#allocation2 + $0x49]]
    %v678 = vstv %s677
    %v679 = vmul.f32 %v678, %v79
    %v680 = vmul.f32 %v678, %v80
    %v681 = vadd.f32 %v675, %v679
    %v682 = vadd.f32 %v676, %v680
    %v685 = vcombine.low %v681, %v682
    %v687 = vunpack.c.l.s4 1966171168
    %v688 = vunpack.c.0.s8 %v687
    %v689 = vlaneseq
    %v690 = vshrl.u32 %v689, 7
    %v691 = vsub.s32 %v688, %v690
    %v692 = vrot.slane %v685, %v691
    %v693 = vcombine.high %v692, %v692
    %v695 = vunpack.c.l.s4 1966171168
    %v696 = vunpack.c.0.s8 %v695
    %v697 = vlaneseq
    %v698 = vshrl.u32 %v697, 7
    %v699 = vsub.s32 %v696, %v698
    %v700 = vrot.slane %v692, %v699
    %v702 = vunpack.c.l.s4 1966171168
    %v703 = vunpack.c.0.s8 %v702
    %v704 = vlaneseq
    %v705 = vshrl.u32 %v704, 7
    %v706 = vsub.s32 %v703, %v705
    %v707 = vrot.slane %v693, %v706
    %v710 = vadd.f32 %v518, %v700
    %v711 = vadd.f32 %v519, %v707
    %s712 = sld [smem:[#allocation2 + $0x19]]
    %v713 = vstv %s712
    %v714 = vmul.f32 %v713, %v81
    %v715 = vmul.f32 %v713, %v82
    %s716 = sld [smem:[#allocation2 + $0x4a]]
    %v717 = vstv %s716
    %v718 = vmul.f32 %v717, %v79
    %v719 = vmul.f32 %v717, %v80
    %v720 = vadd.f32 %v714, %v718
    %v721 = vadd.f32 %v715, %v719
    %v724 = vcombine.low %v720, %v721
    %v726 = vunpack.c.l.s4 1966171168
    %v727 = vunpack.c.0.s8 %v726
    %v728 = vlaneseq
    %v729 = vshrl.u32 %v728, 7
    %v730 = vsub.s32 %v727, %v729
    %v731 = vrot.slane %v724, %v730
    %v732 = vcombine.high %v731, %v731
    %v734 = vunpack.c.l.s4 1966171168
    %v735 = vunpack.c.0.s8 %v734
    %v736 = vlaneseq
    %v737 = vshrl.u32 %v736, 7
    %v738 = vsub.s32 %v735, %v737
    %v739 = vrot.slane %v731, %v738
    %v741 = vunpack.c.l.s4 1966171168
    %v742 = vunpack.c.0.s8 %v741
    %v743 = vlaneseq
    %v744 = vshrl.u32 %v743, 7
    %v745 = vsub.s32 %v742, %v744
    %v746 = vrot.slane %v732, %v745
    %v749 = vadd.f32 %v530, %v739
    %v750 = vadd.f32 %v531, %v746
    %s751 = sld [smem:[#allocation2 + $0x1a]]
    %v752 = vstv %s751
    %v753 = vmul.f32 %v752, %v81
    %v754 = vmul.f32 %v752, %v82
    %s755 = sld [smem:[#allocation2 + $0x4b]]
    %v756 = vstv %s755
    %v757 = vmul.f32 %v756, %v79
    %v758 = vmul.f32 %v756, %v80
    %v759 = vadd.f32 %v753, %v757
    %v760 = vadd.f32 %v754, %v758
    %v763 = vcombine.low %v759, %v760
    %v765 = vunpack.c.l.s4 1966171168
    %v766 = vunpack.c.0.s8 %v765
    %v767 = vlaneseq
    %v768 = vshrl.u32 %v767, 7
    %v769 = vsub.s32 %v766, %v768
    %v770 = vrot.slane %v763, %v769
    %v771 = vcombine.high %v770, %v770
    %v773 = vunpack.c.l.s4 1966171168
    %v774 = vunpack.c.0.s8 %v773
    %v775 = vlaneseq
    %v776 = vshrl.u32 %v775, 7
    %v777 = vsub.s32 %v774, %v776
    %v778 = vrot.slane %v770, %v777
    %v780 = vunpack.c.l.s4 1966171168
    %v781 = vunpack.c.0.s8 %v780
    %v782 = vlaneseq
    %v783 = vshrl.u32 %v782, 7
    %v784 = vsub.s32 %v781, %v783
    %v785 = vrot.slane %v771, %v784
    %v788 = vadd.f32 %v542, %v778
    %v789 = vadd.f32 %v543, %v785
    %s790 = sld [smem:[#allocation2 + $0x1b]]
    %v791 = vstv %s790
    %v792 = vmul.f32 %v791, %v81
    %v793 = vmul.f32 %v791, %v82
    %s794 = sld [smem:[#allocation2 + $0x4c]]
    %v795 = vstv %s794
    %v796 = vmul.f32 %v795, %v79
    %v797 = vmul.f32 %v795, %v80
    %v798 = vadd.f32 %v792, %v796
    %v799 = vadd.f32 %v793, %v797
    %v802 = vcombine.low %v798, %v799
    %v804 = vunpack.c.l.s4 1966171168
    %v805 = vunpack.c.0.s8 %v804
    %v806 = vlaneseq
    %v807 = vshrl.u32 %v806, 7
    %v808 = vsub.s32 %v805, %v807
    %v809 = vrot.slane %v802, %v808
    %v810 = vcombine.high %v809, %v809
    %v812 = vunpack.c.l.s4 1966171168
    %v813 = vunpack.c.0.s8 %v812
    %v814 = vlaneseq
    %v815 = vshrl.u32 %v814, 7
    %v816 = vsub.s32 %v813, %v815
    %v817 = vrot.slane %v809, %v816
    %v819 = vunpack.c.l.s4 1966171168
    %v820 = vunpack.c.0.s8 %v819
    %v821 = vlaneseq
    %v822 = vshrl.u32 %v821, 7
    %v823 = vsub.s32 %v820, %v822
    %v824 = vrot.slane %v810, %v823
    %v827 = vadd.f32 %v554, %v817
    %v828 = vadd.f32 %v555, %v824
    %s829 = sld [smem:[#allocation2 + $0x1c]]
    %v830 = vstv %s829
    %v831 = vmul.f32 %v830, %v254
    %v832 = vmul.f32 %v830, %v255
    %s833 = sld [smem:[#allocation2 + $0x4d]]
    %v834 = vstv %s833
    %v835 = vmul.f32 %v834, %v256
    %v836 = vmul.f32 %v834, %v257
    %v837 = vadd.f32 %v831, %v835
    %v838 = vadd.f32 %v832, %v836
    %v839 = vadd.f32 %v593, %v837
    %v840 = vadd.f32 %v594, %v838
    %s841 = sld [smem:[#allocation2 + $0x1d]]
    %v842 = vstv %s841
    %v843 = vmul.f32 %v842, %v254
    %v844 = vmul.f32 %v842, %v255
    %s845 = sld [smem:[#allocation2 + $0x4e]]
    %v846 = vstv %s845
    %v847 = vmul.f32 %v846, %v256
    %v848 = vmul.f32 %v846, %v257
    %v849 = vadd.f32 %v843, %v847
    %v850 = vadd.f32 %v844, %v848
    %v851 = vadd.f32 %v632, %v849
    %v852 = vadd.f32 %v633, %v850
    %s853 = sld [smem:[#allocation2 + $0x1e]]
    %v854 = vstv %s853
    %v855 = vmul.f32 %v854, %v254
    %v856 = vmul.f32 %v854, %v255
    %s857 = sld [smem:[#allocation2 + $0x4f]]
    %v858 = vstv %s857
    %v859 = vmul.f32 %v858, %v256
    %v860 = vmul.f32 %v858, %v257
    %v861 = vadd.f32 %v855, %v859
    %v862 = vadd.f32 %v856, %v860
    %v863 = vadd.f32 %v671, %v861
    %v864 = vadd.f32 %v672, %v862
    %s865 = sld [smem:[#allocation2 + $0x1f]]
    %v866 = vstv %s865
    %v867 = vmul.f32 %v866, %v254
    %v868 = vmul.f32 %v866, %v255
    %s869 = sld [smem:[#allocation2 + $0x50]]
    %v870 = vstv %s869
    %v871 = vmul.f32 %v870, %v256
    %v872 = vmul.f32 %v870, %v257
    %v873 = vadd.f32 %v867, %v871
    %v874 = vadd.f32 %v868, %v872
    %v875 = vadd.f32 %v710, %v873
    %v876 = vadd.f32 %v711, %v874
    %s877 = sld [smem:[#allocation2 + $0x20]]
    %v878 = vstv %s877
    %v879 = vmul.f32 %v878, %v254
    %v880 = vmul.f32 %v878, %v255
    %s881 = sld [smem:[#allocation2 + $0x51]]
    %v882 = vstv %s881
    %v883 = vmul.f32 %v882, %v256
    %v884 = vmul.f32 %v882, %v257
    %v885 = vadd.f32 %v879, %v883
    %v886 = vadd.f32 %v880, %v884
    %v887 = vadd.f32 %v749, %v885
    %v888 = vadd.f32 %v750, %v886
    %s889 = sld [smem:[#allocation2 + $0x21]]
    %v890 = vstv %s889
    %v891 = vmul.f32 %v890, %v254
    %v892 = vmul.f32 %v890, %v255
    %s893 = sld [smem:[#allocation2 + $0x52]]
    %v894 = vstv %s893
    %v895 = vmul.f32 %v894, %v256
    %v896 = vmul.f32 %v894, %v257
    %v897 = vadd.f32 %v891, %v895
    %v898 = vadd.f32 %v892, %v896
    %v899 = vadd.f32 %v788, %v897
    %v900 = vadd.f32 %v789, %v898
    %s901 = sld [smem:[#allocation2 + $0x22]]
    %v902 = vstv %s901
    %v903 = vmul.f32 %v902, %v254
    %v904 = vmul.f32 %v902, %v255
    %s905 = sld [smem:[#allocation2 + $0x53]]
    %v906 = vstv %s905
    %v907 = vmul.f32 %v906, %v256
    %v908 = vmul.f32 %v906, %v257
    %v909 = vadd.f32 %v903, %v907
    %v910 = vadd.f32 %v904, %v908
    %v911 = vadd.f32 %v827, %v909
    %v912 = vadd.f32 %v828, %v910
    %s913 = sld [smem:[#allocation2 + $0x23]]
    %v914 = vstv %s913
    %v915 = vmul.f32 %v914, %v284
    %v916 = vmul.f32 %v914, %v285
    %s917 = sld [smem:[#allocation2 + $0x54]]
    %v918 = vstv %s917
    %v919 = vmul.f32 %v918, %v286
    %v920 = vmul.f32 %v918, %v287
    %v921 = vadd.f32 %v915, %v919
    %v922 = vadd.f32 %v916, %v920
    %v923 = vadd.f32 %v839, %v921
    %v924 = vadd.f32 %v840, %v922
    %s925 = sld [smem:[#allocation2 + $0x24]]
    %v926 = vstv %s925
    %v927 = vmul.f32 %v926, %v284
    %v928 = vmul.f32 %v926, %v285
    %s929 = sld [smem:[#allocation2 + $0x55]]
    %v930 = vstv %s929
    %v931 = vmul.f32 %v930, %v286
    %v932 = vmul.f32 %v930, %v287
    %v933 = vadd.f32 %v927, %v931
    %v934 = vadd.f32 %v928, %v932
    %v935 = vadd.f32 %v851, %v933
    %v936 = vadd.f32 %v852, %v934
    %s937 = sld [smem:[#allocation2 + $0x25]]
    %v938 = vstv %s937
    %v939 = vmul.f32 %v938, %v284
    %v940 = vmul.f32 %v938, %v285
    %s941 = sld [smem:[#allocation2 + $0x56]]
    %v942 = vstv %s941
    %v943 = vmul.f32 %v942, %v286
    %v944 = vmul.f32 %v942, %v287
    %v945 = vadd.f32 %v939, %v943
    %v946 = vadd.f32 %v940, %v944
    %v947 = vadd.f32 %v863, %v945
    %v948 = vadd.f32 %v864, %v946
    %s949 = sld [smem:[#allocation2 + $0x26]]
    %v950 = vstv %s949
    %v951 = vmul.f32 %v950, %v284
    %v952 = vmul.f32 %v950, %v285
    %s953 = sld [smem:[#allocation2 + $0x57]]
    %v954 = vstv %s953
    %v955 = vmul.f32 %v954, %v286
    %v956 = vmul.f32 %v954, %v287
    %v957 = vadd.f32 %v951, %v955
    %v958 = vadd.f32 %v952, %v956
    %v959 = vadd.f32 %v875, %v957
    %v960 = vadd.f32 %v876, %v958
    %s961 = sld [smem:[#allocation2 + $0x27]]
    %v962 = vstv %s961
    %v963 = vmul.f32 %v962, %v284
    %v964 = vmul.f32 %v962, %v285
    %s965 = sld [smem:[#allocation2 + $0x58]]
    %v966 = vstv %s965
    %v967 = vmul.f32 %v966, %v286
    %v968 = vmul.f32 %v966, %v287
    %v969 = vadd.f32 %v963, %v967
    %v970 = vadd.f32 %v964, %v968
    %v971 = vadd.f32 %v887, %v969
    %v972 = vadd.f32 %v888, %v970
    %s973 = sld [smem:[#allocation2 + $0x28]]
    %v974 = vstv %s973
    %v975 = vmul.f32 %v974, %v284
    %v976 = vmul.f32 %v974, %v285
    %s977 = sld [smem:[#allocation2 + $0x59]]
    %v978 = vstv %s977
    %v979 = vmul.f32 %v978, %v286
    %v980 = vmul.f32 %v978, %v287
    %v981 = vadd.f32 %v975, %v979
    %v982 = vadd.f32 %v976, %v980
    %v983 = vadd.f32 %v899, %v981
    %v984 = vadd.f32 %v900, %v982
    %s985 = sld [smem:[#allocation2 + $0x29]]
    %v986 = vstv %s985
    %v987 = vmul.f32 %v986, %v284
    %v988 = vmul.f32 %v986, %v285
    %s989 = sld [smem:[#allocation2 + $0x5a]]
    %v990 = vstv %s989
    %v991 = vmul.f32 %v990, %v286
    %v992 = vmul.f32 %v990, %v287
    %v993 = vadd.f32 %v987, %v991
    %v994 = vadd.f32 %v988, %v992
    %v995 = vadd.f32 %v911, %v993
    %v996 = vadd.f32 %v912, %v994
    %s997 = sld [smem:[#allocation2 + $0x2a]]
    %v998 = vstv %s997
    %v999 = vmul.f32 %v998, %v314
    %v1000 = vmul.f32 %v998, %v315
    %s1001 = sld [smem:[#allocation2 + $0x5b]]
    %v1002 = vstv %s1001
    %v1003 = vmul.f32 %v1002, %v316
    %v1004 = vmul.f32 %v1002, %v317
    %v1005 = vadd.f32 %v999, %v1003
    %v1006 = vadd.f32 %v1000, %v1004
    %v1007 = vadd.f32 %v923, %v1005
    %v1008 = vadd.f32 %v924, %v1006
    %s1009 = sld [smem:[#allocation2 + $0x2b]]
    %v1010 = vstv %s1009
    %v1011 = vmul.f32 %v1010, %v314
    %v1012 = vmul.f32 %v1010, %v315
    %s1013 = sld [smem:[#allocation2 + $0x5c]]
    %v1014 = vstv %s1013
    %v1015 = vmul.f32 %v1014, %v316
    %v1016 = vmul.f32 %v1014, %v317
    %v1017 = vadd.f32 %v1011, %v1015
    %v1018 = vadd.f32 %v1012, %v1016
    %v1019 = vadd.f32 %v935, %v1017
    %v1020 = vadd.f32 %v936, %v1018
    %s1021 = sld [smem:[#allocation2 + $0x2c]]
    %v1022 = vstv %s1021
    %v1023 = vmul.f32 %v1022, %v314
    %v1024 = vmul.f32 %v1022, %v315
    %s1025 = sld [smem:[#allocation2 + $0x5d]]
    %v1026 = vstv %s1025
    %v1027 = vmul.f32 %v1026, %v316
    %v1028 = vmul.f32 %v1026, %v317
    %v1029 = vadd.f32 %v1023, %v1027
    %v1030 = vadd.f32 %v1024, %v1028
    %v1031 = vadd.f32 %v947, %v1029
    %v1032 = vadd.f32 %v948, %v1030
    %s1033 = sld [smem:[#allocation2 + $0x2d]]
    %v1034 = vstv %s1033
    %v1035 = vmul.f32 %v1034, %v314
    %v1036 = vmul.f32 %v1034, %v315
    %s1037 = sld [smem:[#allocation2 + $0x5e]]
    %v1038 = vstv %s1037
    %v1039 = vmul.f32 %v1038, %v316
    %v1040 = vmul.f32 %v1038, %v317
    %v1041 = vadd.f32 %v1035, %v1039
    %v1042 = vadd.f32 %v1036, %v1040
    %v1043 = vadd.f32 %v959, %v1041
    %v1044 = vadd.f32 %v960, %v1042
    %s1045 = sld [smem:[#allocation2 + $0x2e]]
    %v1046 = vstv %s1045
    %v1047 = vmul.f32 %v1046, %v314
    %v1048 = vmul.f32 %v1046, %v315
    %s1049 = sld [smem:[#allocation2 + $0x5f]]
    %v1050 = vstv %s1049
    %v1051 = vmul.f32 %v1050, %v316
    %v1052 = vmul.f32 %v1050, %v317
    %v1053 = vadd.f32 %v1047, %v1051
    %v1054 = vadd.f32 %v1048, %v1052
    %v1055 = vadd.f32 %v971, %v1053
    %v1056 = vadd.f32 %v972, %v1054
    %s1057 = sld [smem:[#allocation2 + $0x2f]]
    %v1058 = vstv %s1057
    %v1059 = vmul.f32 %v1058, %v314
    %v1060 = vmul.f32 %v1058, %v315
    %s1061 = sld [smem:[#allocation2 + $0x60]]
    %v1062 = vstv %s1061
    %v1063 = vmul.f32 %v1062, %v316
    %v1064 = vmul.f32 %v1062, %v317
    %v1065 = vadd.f32 %v1059, %v1063
    %v1066 = vadd.f32 %v1060, %v1064
    %v1067 = vadd.f32 %v983, %v1065
    %v1068 = vadd.f32 %v984, %v1066
    %s1069 = sld [smem:[#allocation2 + $0x30]]
    %v1070 = vstv %s1069
    %v1071 = vmul.f32 %v1070, %v314
    %v1072 = vmul.f32 %v1070, %v315
    %s1073 = sld [smem:[#allocation2 + $0x61]]
    %v1074 = vstv %s1073
    %v1075 = vmul.f32 %v1074, %v316
    %v1076 = vmul.f32 %v1074, %v317
    %v1077 = vadd.f32 %v1071, %v1075
    %v1078 = vadd.f32 %v1072, %v1076
    %v1079 = vadd.f32 %v995, %v1077
    %v1080 = vadd.f32 %v996, %v1078
    %1081 = vrot.lane.b32.xlu0 %v1007, 3
    %v1082 = vpop.permute.xlu0 %1081
    %1083 = vrot.lane.b32.xlu0 %v1008, 3
    %v1084 = vpop.permute.xlu0 %1083
    %vm1085 = vcmp.lt.s32.totalorder %v115, 3
    %v1086 = vsel %vm1085, %v1082, %v1084
    %v1087 = vsel %vm1085, %v1084, %v1082
    %s1088 = scalar_lea.vmem [#allocation6], 7
    %v1089 = vld [vmem:[%s1088] ss:$8 sm:$0x3]
    %v1091 = vlaneseq
    %v1092 = vshrl.u32 %v1091, 7
    %v1093 = vsub.s32 0, %v1092
    %v1094 = vrot.slane %v1089, %v1093
    %v1095 = vlaneseq
    %v1096 = vshrl.u32 %v1095, 7
    %v1097 = vsub.s32 1, %v1096
    %v1098 = vrot.slane %v1089, %v1097
    %v1101 = vmul.f32 %v1087, %v1094
    %v1102 = vmul.f32 %v1086, %v1098
    %1103 = vrot.lane.b32.xlu0 %v1019, 2
    %v1104 = vpop.permute.xlu0 %1103
    %1105 = vrot.lane.b32.xlu0 %v1020, 2
    %v1106 = vpop.permute.xlu0 %1105
    %vm1107 = vcmp.lt.s32.totalorder %v115, 2
    %v1108 = vsel %vm1107, %v1104, %v1106
    %v1109 = vsel %vm1107, %v1106, %v1104
    %s1110 = scalar_lea.vmem [#allocation6], 16
    %v1111 = vld [vmem:[%s1110] ss:$8 sm:$0x3]
    %v1113 = vlaneseq
    %v1114 = vshrl.u32 %v1113, 7
    %v1115 = vsub.s32 0, %v1114
    %v1116 = vrot.slane %v1111, %v1115
    %v1117 = vlaneseq
    %v1118 = vshrl.u32 %v1117, 7
    %v1119 = vsub.s32 1, %v1118
    %v1120 = vrot.slane %v1111, %v1119
    %v1123 = vmul.f32 %v1109, %v1116
    %v1124 = vmul.f32 %v1108, %v1120
    %1125 = vrot.lane.b32.xlu0 %v1031, 1
    %v1126 = vpop.permute.xlu0 %1125
    %1127 = vrot.lane.b32.xlu0 %v1032, 1
    %v1128 = vpop.permute.xlu0 %1127
    %vm1129 = vcmp.lt.s32.totalorder %v115, 1
    %v1130 = vsel %vm1129, %v1126, %v1128
    %v1131 = vsel %vm1129, %v1128, %v1126
    %s1132 = scalar_lea.vmem [#allocation6], 17
    %v1133 = vld [vmem:[%s1132] ss:$8 sm:$0x3]
    %v1135 = vlaneseq
    %v1136 = vshrl.u32 %v1135, 7
    %v1137 = vsub.s32 0, %v1136
    %v1138 = vrot.slane %v1133, %v1137
    %v1139 = vlaneseq
    %v1140 = vshrl.u32 %v1139, 7
    %v1141 = vsub.s32 1, %v1140
    %v1142 = vrot.slane %v1133, %v1141
    %v1145 = vmul.f32 %v1131, %v1138
    %v1146 = vmul.f32 %v1130, %v1142
    %1147 = vrot.lane.b32.xlu0 %v1055, 127
    %v1148 = vpop.permute.xlu0 %1147
    %1149 = vrot.lane.b32.xlu0 %v1056, 127
    %v1150 = vpop.permute.xlu0 %1149
    %vm1151 = vcmp.lt.s32.totalorder %v115, 127
    %v1152 = vsel %vm1151, %v1148, %v1150
    %v1153 = vsel %vm1151, %v1150, %v1148
    %s1154 = scalar_lea.vmem [#allocation6], 19
    %v1155 = vld [vmem:[%s1154] ss:$8 sm:$0x3]
    %v1157 = vlaneseq
    %v1158 = vshrl.u32 %v1157, 7
    %v1159 = vsub.s32 0, %v1158
    %v1160 = vrot.slane %v1155, %v1159
    %v1161 = vlaneseq
    %v1162 = vshrl.u32 %v1161, 7
    %v1163 = vsub.s32 1, %v1162
    %v1164 = vrot.slane %v1155, %v1163
    %v1167 = vmul.f32 %v1152, %v1160
    %v1168 = vmul.f32 %v1153, %v1164
    %1169 = vrot.lane.b32.xlu0 %v1067, 126
    %v1170 = vpop.permute.xlu0 %1169
    %1171 = vrot.lane.b32.xlu0 %v1068, 126
    %v1172 = vpop.permute.xlu0 %1171
    %vm1173 = vcmp.lt.s32.totalorder %v115, 126
    %v1174 = vsel %vm1173, %v1170, %v1172
    %v1175 = vsel %vm1173, %v1172, %v1170
    %s1176 = scalar_lea.vmem [#allocation6], 20
    %v1177 = vld [vmem:[%s1176] ss:$8 sm:$0x3]
    %v1179 = vlaneseq
    %v1180 = vshrl.u32 %v1179, 7
    %v1181 = vsub.s32 0, %v1180
    %v1182 = vrot.slane %v1177, %v1181
    %v1183 = vlaneseq
    %v1184 = vshrl.u32 %v1183, 7
    %v1185 = vsub.s32 1, %v1184
    %v1186 = vrot.slane %v1177, %v1185
    %v1189 = vmul.f32 %v1174, %v1182
    %v1190 = vmul.f32 %v1175, %v1186
    %1191 = vrot.lane.b32.xlu0 %v1079, 125
    %v1192 = vpop.permute.xlu0 %1191
    %1193 = vrot.lane.b32.xlu0 %v1080, 125
    %v1194 = vpop.permute.xlu0 %1193
    %vm1195 = vcmp.lt.s32.totalorder %v115, 125
    %v1196 = vsel %vm1195, %v1192, %v1194
    %v1197 = vsel %vm1195, %v1194, %v1192
    %s1198 = scalar_lea.vmem [#allocation6], 21
    %v1199 = vld [vmem:[%s1198] ss:$8 sm:$0x3]
    %v1201 = vlaneseq
    %v1202 = vshrl.u32 %v1201, 7
    %v1203 = vsub.s32 0, %v1202
    %v1204 = vrot.slane %v1199, %v1203
    %v1205 = vlaneseq
    %v1206 = vshrl.u32 %v1205, 7
    %v1207 = vsub.s32 1, %v1206
    %v1208 = vrot.slane %v1199, %v1207
    %v1211 = vmul.f32 %v1196, %v1204
    %v1212 = vmul.f32 %v1197, %v1208
    %v1213 = vadd.f32 %v1101, %v1123
    %v1214 = vadd.f32 %v1102, %v1124
    %v1215 = vadd.f32 %v1145, %v1043
    %v1216 = vadd.f32 %v1146, %v1044
    %v1217 = vadd.f32 %v1167, %v1189
    %v1218 = vadd.f32 %v1168, %v1190
    %v1219 = vadd.f32 %v1213, %v1215
    %v1220 = vadd.f32 %v1214, %v1216
    %v1221 = vadd.f32 %v1217, %v1211
    %v1222 = vadd.f32 %v1218, %v1212
    %v1223 = vadd.f32 %v1219, %v1221
    %v1224 = vadd.f32 %v1220, %v1222
    %s1225 = sld [smem:[#allocation2 + $0x62]]
    %v1226 = vstv %s1225
    %v1227 = vadd.f32 %v1223, %v1226
    %v1228 = vadd.f32 %v1224, %v1226
    %v1229 = vxor.u32 %v1227, 2147483648
    %v1230 = vxor.u32 %v1228, 2147483648
    %v1231 = vmul.f32 %v1229, 1.442695
    %v1232 = vpow.pop %v1231
    %v1233 = vmul.f32 %v1230, 1.442695
    %v1234 = vpow.pop %v1233
    %v1235 = vadd.f32 %v1232, 1.0
    %v1236 = vadd.f32 %v1234, 1.0
    %v1237 = vrcp.pop %v1235
    %v1238 = vmul.f32 1.0, %v1237
    %v1239 = vrcp.pop %v1236
    %v1240 = vmul.f32 1.0, %v1239
    %v1243 = vcombine.low %v1238, %v1240
    %v1245 = vunpack.c.l.s4 1983009808
    %v1246 = vunpack.c.0.s8 %v1245
    %v1247 = vlaneseq
    %v1248 = vshrl.u32 %v1247, 7
    %v1249 = vsub.s32 %v1246, %v1248
    %v1250 = vrot.slane %v1243, %v1249
    %1252 = vst [vmem:[#allocation9] sm:$0xf] %v1250
    // Predicated region
    $region26: #{tpu_custom_call.1} parent=1 // pred_check
      _
    $region27: #{tpu_custom_call.1} parent=1 // pred_check_branch
      %1254 = sbr.rel (0) target = $region29
    $region28: #{tpu_custom_call.1} parent=1 // pred_region
      %s1256 = ssub.s32 64, 64
      %1257 = vsyncadd [#allocation4], %s1256
      %s1259 = sshll.u32 [#allocation9], 4
      %s1260 = int_to_ptr.vmem [resolvable:$true] %s1259
      %1262 = dma.vmem_to_hbm [thread:$0]  %s1260, 64, %s3, [#allocation4]
    $region29: #{tpu_custom_call.1} parent=1 // pred_fallthru
      _
    // Predicated region
    $region30: #{tpu_custom_call.1} parent=1 // pred_check
      _
    $region31: #{tpu_custom_call.1} parent=1 // pred_check_branch
      %1264 = sbr.rel (0) target = $region33
    $region32: #{tpu_custom_call.1} parent=1 // pred_region
      %1265 = dma.done [#allocation4], 64
    $region33: #{tpu_custom_call.1} parent=1 // pred_fallthru
      _
    %1266 = vsyncpa [#allocation3], 1
    %1267 = vsyncpa [#allocation8], 1
    %1268 = vsyncpa [#allocation4], 1
    %1269 = vsyncpa [#allocation5], 1

</llo_original>
